<compile_context>
chip_gen: v7x
topology: tpu7x:2x2x1
jax: 0.10.0
libtpu: 0.0.40
codegen_flags: <defaults>
</compile_context>

<pallas_src>
import functools

import jax
import jax.numpy as jnp
from jax import lax
from jax.experimental import pallas as pl
from jax.experimental.pallas import tpu as pltpu


# ----------------------------------------------------------------------------
# Fused kernel: one grid step == one graph (everything VMEM/vreg resident)
# ----------------------------------------------------------------------------

def fused_gcn_encoder_kernel(
        a0_ref, a1_ref, x_ref,
        w0_ref, b0_ref, w1_ref, b1_ref,
        pw0_ref, pb0_ref, pw1_ref, pb1_ref,
        emb_ref, loss_ref,
        *, inv_temper, weight, inv_n_dst, tied, mxu_dtype):
    f32 = jnp.float32
    a0 = a0_ref[0]            # (n_dst0, n_src0)
    a1 = a1_ref[0]            # (n_dst1, n_dst0)
    x = x_ref[0]              # (n_src0, in_dim)
    n_dst1 = a1.shape[0]

    def mm(a, b):
        # MXU matmul; operands optionally cast (bf16 on v6e/v7x), f32 accumulate
        return jnp.dot(a.astype(mxu_dtype), b.astype(mxu_dtype),
                       preferred_element_type=f32)

    def sym_norm(a):
        # DGL GraphConv norm='both': D_dst^-1/2 A D_src^-1/2 (degrees clamped >=1)
        deg_dst = jnp.maximum(jnp.sum(a, axis=1, keepdims=True), 1.0)
        deg_src = jnp.maximum(jnp.sum(a, axis=0, keepdims=True), 1.0)
        return a * lax.rsqrt(deg_dst) * lax.rsqrt(deg_src)      # EUP rsqrt

    def l2norm(h):
        # F.normalize(h, p=2, dim=-1) via rsqrt (no full-width divide)
        nrm2 = jnp.sum(h * h, axis=-1, keepdims=True)
        return h * lax.rsqrt(jnp.maximum(nrm2, 1e-24))

    a0n = sym_norm(a0)
    a1n = sym_norm(a1)

    # --- GraphConv layers.  tied:  w0=(in,H),  w1=(H,O)   -> conv branch only
    #                       untied: w0=(in,2H), w1 block-diag (2H,2O) -> both
    #                               branches in the same MXU passes. ----------
    h0 = mm(a0n, mm(x, w0_ref[...])) + b0_ref[...]     # (n_dst0, H | 2H)
    cm = mm(a1n, mm(h0, w1_ref[...])) + b1_ref[...]    # (n_dst1, O | 2O)

    if tied:
        m0 = h0                                        # moco layer-0 == conv
        conv_h = l2norm(cm)
        moco_h = conv_h
    else:
        m0 = h0[:, h0.shape[-1] // 2:]                 # moco layer-0 output
        half = cm.shape[-1] // 2
        conv_h = l2norm(cm[:, :half])
        moco_h = l2norm(cm[:, half:])

    # --- Projector (num_layers=2): relu(L0) -> relu(L1) -> L1  (L1 applied
    #     twice, exactly as the PyTorch Projector.forward does). --------------
    p = jnp.maximum(mm(conv_h, pw0_ref[...]) + pb0_ref[...], 0.0)
    p = jnp.maximum(mm(p, pw1_ref[...]) + pb1_ref[...], 0.0)
    p = mm(p, pw1_ref[...]) + pb1_ref[...]
    proj_h = l2norm(p)

    # --- neighbor_feats_sampler over blocks[-1]: src feats are m0 at this
    #     point.  mean-then-normalize == normalize(sum) for in-degree >= 1. ---
    nbr = l2norm(mm(a1, m0))

    # --- Fused InfoNCE: one NT dot_general against [moco_h ; nbr] (2N, D).
    #     simT[j, i] = other[j] . proj_h[i]; halves split on the sublane axis
    #     (aligned), logsumexp reduces over the "other" (sublane) axis. -------
    other = jnp.concatenate([moco_h, nbr], axis=0)                 # (2N, D)
    simT = lax.dot_general(other.astype(mxu_dtype), proj_h.astype(mxu_dtype),
                           (((1,), (1,)), ((), ())),
                           preferred_element_type=f32) * inv_temper  # (2N, N)

    def lse_over_rows(s):   # numerically-stable logsumexp over axis 0 -> (1, N)
        m = jnp.max(s, axis=0, keepdims=True)
        return m + jnp.log(jnp.sum(jnp.exp(s - m), axis=0, keepdims=True))

    lse_m = lse_over_rows(simT[:n_dst1])
    lse_n = lse_over_rows(simT[n_dst1:])
    # diagonal of sim via elementwise mul + lane reduce (no iota/where/select)
    diag_m = jnp.sum(proj_h * moco_h, axis=-1, keepdims=True) * inv_temper
    diag_n = jnp.sum(proj_h * nbr, axis=-1, keepdims=True) * inv_temper

    loss = ((jnp.sum(lse_m) - jnp.sum(diag_m))
            + weight * (jnp.sum(lse_n) - jnp.sum(diag_n)))

    emb_ref[0, 0] = proj_h.astype(emb_ref.dtype)
    emb_ref[0, 1] = moco_h.astype(emb_ref.dtype)
    loss_ref[0] = (loss * inv_n_dst).reshape(1, 1)


# ----------------------------------------------------------------------------
# Wrapper: one pallas_call for a BATCH of graphs, grid=(B,) "parallel"
# ----------------------------------------------------------------------------

def gcn_encoder_forward(params, adjs, x_src, temper, weight, *, tied,
                        mxu_dtype=jnp.float32):
    """GCNEncoder.forward for gnn_layer=2, projector_layer=2, batched over B graphs.

    adjs = (a0, a1): dense block adjacencies, shapes (B, n_dst0, n_src0) and
    (B, n_dst1, n_dst0).  x_src: (B, n_src0, input_dim).  `tied` must be set
    explicitly (moco branch is a deepcopy of the conv branch; it stays tied
    until adapt() perturbs it).
    Returns (loss[B], proj_h[B, n_dst1, O], moco_h[B, n_dst1, O]).
    """
    a0, a1 = adjs
    B, n_dst0, n_src0 = a0.shape
    _, n_dst1, _ = a1.shape
    in_dim = x_src.shape[-1]
    H = params["conv_w0"].shape[1]
    O = params["conv_w1"].shape[1]
    f32 = jnp.float32

    if tied:
        w0 = params["conv_w0"]
        b0 = params["conv_b0"].reshape(1, -1)
        w1 = params["conv_w1"]
        b1 = params["conv_b1"].reshape(1, -1)
    else:
        # Fuse conv + moco along the output (lane) axis; layer 1 is block-diag
        # so no in-kernel re-concat is needed before the A1n matmul.
        w0 = jnp.concatenate([params["conv_w0"], params["moco_w0"]], axis=1)
        b0 = jnp.concatenate([params["conv_b0"], params["moco_b0"]]).reshape(1, -1)
        w1 = jnp.zeros((2 * H, 2 * O), f32)
        w1 = w1.at[:H, :O].set(params["conv_w1"]).at[H:, O:].set(params["moco_w1"])
        b1 = jnp.concatenate([params["conv_b1"], params["moco_b1"]]).reshape(1, -1)

    pw0 = params["proj_w0"]
    pb0 = params["proj_b0"].reshape(1, -1)
    pw1 = params["proj_w1"]
    pb1 = params["proj_b1"].reshape(1, -1)

    args = (a0, a1, x_src, w0, b0, w1, b1, pw0, pb0, pw1, pb1)

    kernel = functools.partial(
        fused_gcn_encoder_kernel,
        inv_temper=1.0 / float(temper), weight=float(weight),
        inv_n_dst=1.0 / float(n_dst1), tied=tied, mxu_dtype=mxu_dtype)

    def per_graph(shape):                 # batch-sliced block
        nz = (0,) * len(shape)
        return pl.BlockSpec((1,) + tuple(shape), lambda b: (b,) + nz)

    def resident(arr):                    # same block every step -> DMA'd once
        nz = (0,) * arr.ndim
        return pl.BlockSpec(arr.shape, lambda b: nz)

    in_specs = [
        per_graph((n_dst0, n_src0)),
        per_graph((n_dst1, n_dst0)),
        per_graph((n_src0, in_dim)),
        resident(w0), resident(b0), resident(w1), resident(b1),
        resident(pw0), resident(pb0), resident(pw1), resident(pb1),
    ]
    out_specs = [
        per_graph((2, n_dst1, O)),        # [proj_h ; moco_h] in one slab
        per_graph((1, 1)),                # per-graph scalar loss
    ]
    out_shape = (jax.ShapeDtypeStruct((B, 2, n_dst1, O), f32),
                 jax.ShapeDtypeStruct((B, 1, 1), f32))

    # Advisory cost estimate so XLA schedules this tiny call tightly.
    flops = 2 * B * (n_src0 * in_dim * w0.shape[1]
                     + n_dst0 * n_src0 * w0.shape[1]
                     + n_dst0 * w1.shape[0] * w1.shape[1]
                     + n_dst1 * n_dst0 * w1.shape[1]
                     + 3 * n_dst1 * O * O
                     + n_dst1 * n_dst0 * H
                     + 2 * n_dst1 * n_dst1 * O)
    transcendentals = B * (2 * n_dst0 + n_src0 + n_dst1      # sym_norm rsqrt
                           + 4 * n_dst1                       # l2 norms
                           + 2 * n_dst1 * n_dst1 + 2 * n_dst1)  # exp + log
    bytes_accessed = int(sum(int(a.size) * a.dtype.itemsize for a in args)
                         + B * (2 * n_dst1 * O + 1) * 4)

    emb, loss = pl.pallas_call(
        kernel,
        out_shape=out_shape,
        grid_spec=pltpu.PrefetchScalarGridSpec(
            num_scalar_prefetch=0, grid=(B,),
            in_specs=in_specs, out_specs=out_specs),
        compiler_params=pltpu.CompilerParams(
            dimension_semantics=("parallel",)),
        cost_estimate=pl.CostEstimate(
            flops=int(flops), transcendentals=int(transcendentals),
            bytes_accessed=bytes_accessed),
    )(*args)

    return loss[:, 0, 0], emb[:, 0], emb[:, 1]


# ----------------------------------------------------------------------------
# main
# ----------------------------------------------------------------------------

if __name__ == "__main__":
    input_dim, hidden_dim, output_dim = 16, 32, 32
    B, n_src0, n_dst0, n_dst1 = 4, 32, 16, 8        # block0: 32->16, block1: 16->8
    temper, weight = 0.5, 0.8

    key = jax.random.PRNGKey(0)
    ks = jax.random.split(key, 8)

    # deterministic batched block adjacencies (dst, src); self-loops -> deg >= 1
    a0 = jax.random.bernoulli(ks[0], 0.3, (B, n_dst0, n_src0)).astype(jnp.float32)
    a0 = a0.at[:, jnp.arange(n_dst0), jnp.arange(n_dst0)].set(1.0)
    a1 = jax.random.bernoulli(ks[1], 0.3, (B, n_dst1, n_dst0)).astype(jnp.float32)
    a1 = a1.at[:, jnp.arange(n_dst1), jnp.arange(n_dst1)].set(1.0)

    # source node features of the first block
    x_src = jax.random.normal(ks[2], (B, n_src0, input_dim), dtype=jnp.float32)

    # deterministic parameter init (weights stored (in_dim, out_dim))
    conv_w0 = 0.1 * jax.random.normal(ks[3], (input_dim, hidden_dim), jnp.float32)
    conv_b0 = jnp.zeros((hidden_dim,), jnp.float32)
    conv_w1 = 0.1 * jax.random.normal(ks[4], (hidden_dim, output_dim), jnp.float32)
    conv_b1 = jnp.zeros((output_dim,), jnp.float32)

    params = dict(
        conv_w0=conv_w0, conv_b0=conv_b0, conv_w1=conv_w1, conv_b1=conv_b1,
        # moco branch = deepcopy of conv branch (same values, separate arrays)
        moco_w0=conv_w0 + 0.0, moco_b0=conv_b0 + 0.0,
        moco_w1=conv_w1 + 0.0, moco_b1=conv_b1 + 0.0,
        # Projector(output_dim, output_dim, output_dim, num_layers=2)
        proj_w0=0.1 * jax.random.normal(ks[5], (output_dim, output_dim), jnp.float32),
        proj_b0=0.01 * jnp.ones((output_dim,), jnp.float32),
        proj_w1=0.1 * jax.random.normal(ks[6], (output_dim, output_dim), jnp.float32),
        proj_b1=0.01 * jnp.ones((output_dim,), jnp.float32),
    )

    # tied path (as at init): moco weights never leave HBM, no duplicate matmuls
    loss_t, proj_t, moco_t = gcn_encoder_forward(
        params, (a0, a1), x_src, temper, weight, tied=True)
    jax.block_until_ready((loss_t, proj_t, moco_t))

    # untied path (fused conv+moco matmuls); with equal weight values it must
    # reproduce the tied result -> cross-checks the fusion.
    loss_u, proj_u, moco_u = gcn_encoder_forward(
        params, (a0, a1), x_src, temper, weight, tied=False)
    jax.block_until_ready((loss_u, proj_u, moco_u))

    assert proj_t.shape == (B, n_dst1, output_dim)
    assert moco_t.shape == (B, n_dst1, output_dim)
    assert bool(jnp.all(jnp.isfinite(loss_t)))
    assert jnp.allclose(jnp.linalg.norm(proj_t, axis=-1), 1.0, atol=1e-5)
    assert jnp.allclose(jnp.linalg.norm(moco_t, axis=-1), 1.0, atol=1e-5)
    assert jnp.allclose(loss_t, loss_u, atol=1e-5)
    assert jnp.allclose(proj_t, proj_u, atol=1e-5)
    assert jnp.allclose(moco_t, moco_u, atol=1e-5)
    print("KERNEL_OK")
</pallas_src>

<mosaic_0001>
module attributes {stable_mosaic.version = 11 : i64} {
  func.func @fused_gcn_encoder_kernel(%arg0: i32, %arg1: memref<1x16x32xf32, #tpu.memory_space<vmem>>, %arg2: memref<1x8x16xf32, #tpu.memory_space<vmem>>, %arg3: memref<1x32x16xf32, #tpu.memory_space<vmem>>, %arg4: memref<16x32xf32, #tpu.memory_space<vmem>>, %arg5: memref<1x32xf32, #tpu.memory_space<vmem>>, %arg6: memref<32x32xf32, #tpu.memory_space<vmem>>, %arg7: memref<1x32xf32, #tpu.memory_space<vmem>>, %arg8: memref<32x32xf32, #tpu.memory_space<vmem>>, %arg9: memref<1x32xf32, #tpu.memory_space<vmem>>, %arg10: memref<32x32xf32, #tpu.memory_space<vmem>>, %arg11: memref<1x32xf32, #tpu.memory_space<vmem>>, %arg12: memref<1x2x8x32xf32, #tpu.memory_space<vmem>>, %arg13: memref<1x1x1xf32, #tpu.memory_space<vmem>>) attributes {dimension_semantics = [#tpu.dimension_semantics<parallel>], iteration_bounds = array<i64: 4>, scalar_prefetch = 0 : i64, scratch_operands = 0 : i64, tpu.core_type = #tpu.core_type<tc>, window_params = [{transform_indices = @transform_0, window_bounds = array<i64: 1, 16, 32>}, {transform_indices = @transform_1, window_bounds = array<i64: 1, 8, 16>}, {transform_indices = @transform_2, window_bounds = array<i64: 1, 32, 16>}, {pipeline_mode = #tpu.pipeline_mode<synchronous>, transform_indices = @transform_3, window_bounds = array<i64: 16, 32>}, {pipeline_mode = #tpu.pipeline_mode<synchronous>, transform_indices = @transform_4, window_bounds = array<i64: 1, 32>}, {pipeline_mode = #tpu.pipeline_mode<synchronous>, transform_indices = @transform_5, window_bounds = array<i64: 32, 32>}, {pipeline_mode = #tpu.pipeline_mode<synchronous>, transform_indices = @transform_6, window_bounds = array<i64: 1, 32>}, {pipeline_mode = #tpu.pipeline_mode<synchronous>, transform_indices = @transform_7, window_bounds = array<i64: 32, 32>}, {pipeline_mode = #tpu.pipeline_mode<synchronous>, transform_indices = @transform_8, window_bounds = array<i64: 1, 32>}, {pipeline_mode = #tpu.pipeline_mode<synchronous>, transform_indices = @transform_9, window_bounds = array<i64: 32, 32>}, {pipeline_mode = #tpu.pipeline_mode<synchronous>, transform_indices = @transform_10, window_bounds = array<i64: 1, 32>}, {transform_indices = @transform_11, window_bounds = array<i64: 1, 2, 8, 32>}, {transform_indices = @transform_12, window_bounds = array<i64: 1, 1, 1>}]} {
    %c0 = arith.constant 0 : index
    %c0_0 = arith.constant 0 : index
    %c0_1 = arith.constant 0 : index
    %0 = vector.load %arg1[%c0, %c0_0, %c0_1] : memref<1x16x32xf32, #tpu.memory_space<vmem>>, vector<1x16x32xf32>
    %1 = vector.shape_cast %0 : vector<1x16x32xf32> to vector<16x32xf32>
    %c0_2 = arith.constant 0 : index
    %c0_3 = arith.constant 0 : index
    %c0_4 = arith.constant 0 : index
    %2 = vector.load %arg2[%c0_2, %c0_3, %c0_4] : memref<1x8x16xf32, #tpu.memory_space<vmem>>, vector<1x8x16xf32>
    %3 = vector.shape_cast %2 : vector<1x8x16xf32> to vector<8x16xf32>
    %c0_5 = arith.constant 0 : index
    %c0_6 = arith.constant 0 : index
    %c0_7 = arith.constant 0 : index
    %4 = vector.load %arg3[%c0_5, %c0_6, %c0_7] : memref<1x32x16xf32, #tpu.memory_space<vmem>>, vector<1x32x16xf32>
    %5 = vector.shape_cast %4 : vector<1x32x16xf32> to vector<32x16xf32>
    %cst = arith.constant dense<0.000000e+00> : vector<16xf32>
    %6 = vector.multi_reduction <add>, %1, %cst [1] : vector<16x32xf32> to vector<16xf32>
    %7 = vector.shape_cast %6 : vector<16xf32> to vector<16x1xf32>
    %cst_8 = arith.constant 1.000000e+00 : f32
    %8 = vector.broadcast %cst_8 : f32 to vector<16x1xf32>
    %9 = arith.maximumf %7, %8 : vector<16x1xf32>
    %cst_9 = arith.constant dense<0.000000e+00> : vector<32xf32>
    %10 = vector.multi_reduction <add>, %1, %cst_9 [0] : vector<16x32xf32> to vector<32xf32>
    %11 = vector.shape_cast %10 : vector<32xf32> to vector<1x32xf32>
    %cst_10 = arith.constant 1.000000e+00 : f32
    %12 = vector.broadcast %cst_10 : f32 to vector<1x32xf32>
    %13 = arith.maximumf %11, %12 : vector<1x32xf32>
    %14 = math.rsqrt %9 : vector<16x1xf32>
    %15 = vector.broadcast %14 : vector<16x1xf32> to vector<16x32xf32>
    %16 = arith.mulf %1, %15 : vector<16x32xf32>
    %17 = math.rsqrt %13 : vector<1x32xf32>
    %18 = vector.broadcast %17 : vector<1x32xf32> to vector<16x32xf32>
    %19 = arith.mulf %16, %18 : vector<16x32xf32>
    %cst_11 = arith.constant dense<0.000000e+00> : vector<8xf32>
    %20 = vector.multi_reduction <add>, %3, %cst_11 [1] : vector<8x16xf32> to vector<8xf32>
    %21 = vector.shape_cast %20 : vector<8xf32> to vector<8x1xf32>
    %cst_12 = arith.constant 1.000000e+00 : f32
    %22 = vector.broadcast %cst_12 : f32 to vector<8x1xf32>
    %23 = arith.maximumf %21, %22 : vector<8x1xf32>
    %cst_13 = arith.constant dense<0.000000e+00> : vector<16xf32>
    %24 = vector.multi_reduction <add>, %3, %cst_13 [0] : vector<8x16xf32> to vector<16xf32>
    %25 = vector.shape_cast %24 : vector<16xf32> to vector<1x16xf32>
    %cst_14 = arith.constant 1.000000e+00 : f32
    %26 = vector.broadcast %cst_14 : f32 to vector<1x16xf32>
    %27 = arith.maximumf %25, %26 : vector<1x16xf32>
    %28 = math.rsqrt %23 : vector<8x1xf32>
    %29 = vector.broadcast %28 : vector<8x1xf32> to vector<8x16xf32>
    %30 = arith.mulf %3, %29 : vector<8x16xf32>
    %31 = math.rsqrt %27 : vector<1x16xf32>
    %32 = vector.broadcast %31 : vector<1x16xf32> to vector<8x16xf32>
    %33 = arith.mulf %30, %32 : vector<8x16xf32>
    %c0_15 = arith.constant 0 : index
    %c0_16 = arith.constant 0 : index
    %34 = vector.load %arg4[%c0_15, %c0_16] : memref<16x32xf32, #tpu.memory_space<vmem>>, vector<16x32xf32>
    %cst_17 = arith.constant dense<0.000000e+00> : vector<32x32xf32>
    %35 = tpu.matmul %5, %34, %cst_17 {dimension_numbers = #tpu.dot_dimension_numbers<[1], [0], [0], [1], [0, 0, 1, 1], [], []>} : vector<32x16xf32>, vector<16x32xf32>, vector<32x32xf32> -> vector<32x32xf32>
    %cst_18 = arith.constant dense<0.000000e+00> : vector<16x32xf32>
    %36 = tpu.matmul %19, %35, %cst_18 {dimension_numbers = #tpu.dot_dimension_numbers<[1], [0], [0], [1], [0, 0, 1, 1], [], []>} : vector<16x32xf32>, vector<32x32xf32>, vector<16x32xf32> -> vector<16x32xf32>
    %c0_19 = arith.constant 0 : index
    %c0_20 = arith.constant 0 : index
    %37 = vector.load %arg5[%c0_19, %c0_20] : memref<1x32xf32, #tpu.memory_space<vmem>>, vector<1x32xf32>
    %38 = vector.broadcast %37 : vector<1x32xf32> to vector<16x32xf32>
    %39 = arith.addf %36, %38 : vector<16x32xf32>
    %c0_21 = arith.constant 0 : index
    %c0_22 = arith.constant 0 : index
    %40 = vector.load %arg6[%c0_21, %c0_22] : memref<32x32xf32, #tpu.memory_space<vmem>>, vector<32x32xf32>
    %cst_23 = arith.constant dense<0.000000e+00> : vector<16x32xf32>
    %41 = tpu.matmul %39, %40, %cst_23 {dimension_numbers = #tpu.dot_dimension_numbers<[1], [0], [0], [1], [0, 0, 1, 1], [], []>} : vector<16x32xf32>, vector<32x32xf32>, vector<16x32xf32> -> vector<16x32xf32>
    %cst_24 = arith.constant dense<0.000000e+00> : vector<8x32xf32>
    %42 = tpu.matmul %33, %41, %cst_24 {dimension_numbers = #tpu.dot_dimension_numbers<[1], [0], [0], [1], [0, 0, 1, 1], [], []>} : vector<8x16xf32>, vector<16x32xf32>, vector<8x32xf32> -> vector<8x32xf32>
    %c0_25 = arith.constant 0 : index
    %c0_26 = arith.constant 0 : index
    %43 = vector.load %arg7[%c0_25, %c0_26] : memref<1x32xf32, #tpu.memory_space<vmem>>, vector<1x32xf32>
    %44 = vector.broadcast %43 : vector<1x32xf32> to vector<8x32xf32>
    %45 = arith.addf %42, %44 : vector<8x32xf32>
    %46 = arith.mulf %45, %45 : vector<8x32xf32>
    %cst_27 = arith.constant dense<0.000000e+00> : vector<8xf32>
    %47 = vector.multi_reduction <add>, %46, %cst_27 [1] : vector<8x32xf32> to vector<8xf32>
    %48 = vector.shape_cast %47 : vector<8xf32> to vector<8x1xf32>
    %cst_28 = arith.constant 1.000000e-24 : f32
    %49 = vector.broadcast %cst_28 : f32 to vector<8x1xf32>
    %50 = arith.maximumf %48, %49 : vector<8x1xf32>
    %51 = math.rsqrt %50 : vector<8x1xf32>
    %52 = vector.broadcast %51 : vector<8x1xf32> to vector<8x32xf32>
    %53 = arith.mulf %45, %52 : vector<8x32xf32>
    %c0_29 = arith.constant 0 : index
    %c0_30 = arith.constant 0 : index
    %54 = vector.load %arg8[%c0_29, %c0_30] : memref<32x32xf32, #tpu.memory_space<vmem>>, vector<32x32xf32>
    %cst_31 = arith.constant dense<0.000000e+00> : vector<8x32xf32>
    %55 = tpu.matmul %53, %54, %cst_31 {dimension_numbers = #tpu.dot_dimension_numbers<[1], [0], [0], [1], [0, 0, 1, 1], [], []>} : vector<8x32xf32>, vector<32x32xf32>, vector<8x32xf32> -> vector<8x32xf32>
    %c0_32 = arith.constant 0 : index
    %c0_33 = arith.constant 0 : index
    %56 = vector.load %arg9[%c0_32, %c0_33] : memref<1x32xf32, #tpu.memory_space<vmem>>, vector<1x32xf32>
    %57 = vector.broadcast %56 : vector<1x32xf32> to vector<8x32xf32>
    %58 = arith.addf %55, %57 : vector<8x32xf32>
    %cst_34 = arith.constant 0.000000e+00 : f32
    %59 = vector.broadcast %cst_34 : f32 to vector<8x32xf32>
    %60 = arith.maximumf %58, %59 : vector<8x32xf32>
    %c0_35 = arith.constant 0 : index
    %c0_36 = arith.constant 0 : index
    %61 = vector.load %arg10[%c0_35, %c0_36] : memref<32x32xf32, #tpu.memory_space<vmem>>, vector<32x32xf32>
    %cst_37 = arith.constant dense<0.000000e+00> : vector<8x32xf32>
    %62 = tpu.matmul %60, %61, %cst_37 {dimension_numbers = #tpu.dot_dimension_numbers<[1], [0], [0], [1], [0, 0, 1, 1], [], []>} : vector<8x32xf32>, vector<32x32xf32>, vector<8x32xf32> -> vector<8x32xf32>
    %c0_38 = arith.constant 0 : index
    %c0_39 = arith.constant 0 : index
    %63 = vector.load %arg11[%c0_38, %c0_39] : memref<1x32xf32, #tpu.memory_space<vmem>>, vector<1x32xf32>
    %64 = vector.broadcast %63 : vector<1x32xf32> to vector<8x32xf32>
    %65 = arith.addf %62, %64 : vector<8x32xf32>
    %cst_40 = arith.constant 0.000000e+00 : f32
    %66 = vector.broadcast %cst_40 : f32 to vector<8x32xf32>
    %67 = arith.maximumf %65, %66 : vector<8x32xf32>
    %c0_41 = arith.constant 0 : index
    %c0_42 = arith.constant 0 : index
    %68 = vector.load %arg10[%c0_41, %c0_42] : memref<32x32xf32, #tpu.memory_space<vmem>>, vector<32x32xf32>
    %cst_43 = arith.constant dense<0.000000e+00> : vector<8x32xf32>
    %69 = tpu.matmul %67, %68, %cst_43 {dimension_numbers = #tpu.dot_dimension_numbers<[1], [0], [0], [1], [0, 0, 1, 1], [], []>} : vector<8x32xf32>, vector<32x32xf32>, vector<8x32xf32> -> vector<8x32xf32>
    %c0_44 = arith.constant 0 : index
    %c0_45 = arith.constant 0 : index
    %70 = vector.load %arg11[%c0_44, %c0_45] : memref<1x32xf32, #tpu.memory_space<vmem>>, vector<1x32xf32>
    %71 = vector.broadcast %70 : vector<1x32xf32> to vector<8x32xf32>
    %72 = arith.addf %69, %71 : vector<8x32xf32>
    %73 = arith.mulf %72, %72 : vector<8x32xf32>
    %cst_46 = arith.constant dense<0.000000e+00> : vector<8xf32>
    %74 = vector.multi_reduction <add>, %73, %cst_46 [1] : vector<8x32xf32> to vector<8xf32>
    %75 = vector.shape_cast %74 : vector<8xf32> to vector<8x1xf32>
    %cst_47 = arith.constant 1.000000e-24 : f32
    %76 = vector.broadcast %cst_47 : f32 to vector<8x1xf32>
    %77 = arith.maximumf %75, %76 : vector<8x1xf32>
    %78 = math.rsqrt %77 : vector<8x1xf32>
    %79 = vector.broadcast %78 : vector<8x1xf32> to vector<8x32xf32>
    %80 = arith.mulf %72, %79 : vector<8x32xf32>
    %cst_48 = arith.constant dense<0.000000e+00> : vector<8x32xf32>
    %81 = tpu.matmul %3, %39, %cst_48 {dimension_numbers = #tpu.dot_dimension_numbers<[1], [0], [0], [1], [0, 0, 1, 1], [], []>} : vector<8x16xf32>, vector<16x32xf32>, vector<8x32xf32> -> vector<8x32xf32>
    %82 = arith.mulf %81, %81 : vector<8x32xf32>
    %cst_49 = arith.constant dense<0.000000e+00> : vector<8xf32>
    %83 = vector.multi_reduction <add>, %82, %cst_49 [1] : vector<8x32xf32> to vector<8xf32>
    %84 = vector.shape_cast %83 : vector<8xf32> to vector<8x1xf32>
    %cst_50 = arith.constant 1.000000e-24 : f32
    %85 = vector.broadcast %cst_50 : f32 to vector<8x1xf32>
    %86 = arith.maximumf %84, %85 : vector<8x1xf32>
    %87 = math.rsqrt %86 : vector<8x1xf32>
    %88 = vector.broadcast %87 : vector<8x1xf32> to vector<8x32xf32>
    %89 = arith.mulf %81, %88 : vector<8x32xf32>
    %90 = tpu.concatenate %53, %89 in 0 : vector<8x32xf32>, vector<8x32xf32> -> vector<16x32xf32>
    %cst_51 = arith.constant dense<0.000000e+00> : vector<16x8xf32>
    %91 = tpu.matmul %90, %80, %cst_51 {dimension_numbers = #tpu.dot_dimension_numbers<[1], [1], [0], [0], [0, 0, 1, 0], [], []>} : vector<16x32xf32>, vector<8x32xf32>, vector<16x8xf32> -> vector<16x8xf32>
    %cst_52 = arith.constant 2.000000e+00 : f32
    %92 = vector.broadcast %cst_52 : f32 to vector<16x8xf32>
    %93 = arith.mulf %91, %92 : vector<16x8xf32>
    %94 = vector.extract_strided_slice %93 {offsets = [0, 0], sizes = [8, 8], strides = [1, 1]} : vector<16x8xf32> to vector<8x8xf32>
    %cst_53 = arith.constant dense<0xFF800000> : vector<8xf32>
    %95 = vector.multi_reduction <maximumf>, %94, %cst_53 [0] : vector<8x8xf32> to vector<8xf32>
    %96 = vector.shape_cast %95 : vector<8xf32> to vector<1x8xf32>
    %97 = vector.broadcast %96 : vector<1x8xf32> to vector<8x8xf32>
    %98 = arith.subf %94, %97 : vector<8x8xf32>
    %99 = math.exp %98 : vector<8x8xf32>
    %cst_54 = arith.constant dense<0.000000e+00> : vector<8xf32>
    %100 = vector.multi_reduction <add>, %99, %cst_54 [0] : vector<8x8xf32> to vector<8xf32>
    %101 = vector.shape_cast %100 : vector<8xf32> to vector<1x8xf32>
    %102 = math.log %101 : vector<1x8xf32>
    %103 = arith.addf %96, %102 : vector<1x8xf32>
    %104 = vector.extract_strided_slice %93 {offsets = [8, 0], sizes = [8, 8], strides = [1, 1]} : vector<16x8xf32> to vector<8x8xf32>
    %cst_55 = arith.constant dense<0xFF800000> : vector<8xf32>
    %105 = vector.multi_reduction <maximumf>, %104, %cst_55 [0] : vector<8x8xf32> to vector<8xf32>
    %106 = vector.shape_cast %105 : vector<8xf32> to vector<1x8xf32>
    %107 = vector.broadcast %106 : vector<1x8xf32> to vector<8x8xf32>
    %108 = arith.subf %104, %107 : vector<8x8xf32>
    %109 = math.exp %108 : vector<8x8xf32>
    %cst_56 = arith.constant dense<0.000000e+00> : vector<8xf32>
    %110 = vector.multi_reduction <add>, %109, %cst_56 [0] : vector<8x8xf32> to vector<8xf32>
    %111 = vector.shape_cast %110 : vector<8xf32> to vector<1x8xf32>
    %112 = math.log %111 : vector<1x8xf32>
    %113 = arith.addf %106, %112 : vector<1x8xf32>
    %114 = arith.mulf %80, %53 : vector<8x32xf32>
    %cst_57 = arith.constant dense<0.000000e+00> : vector<8xf32>
    %115 = vector.multi_reduction <add>, %114, %cst_57 [1] : vector<8x32xf32> to vector<8xf32>
    %116 = vector.shape_cast %115 : vector<8xf32> to vector<8x1xf32>
    %cst_58 = arith.constant 2.000000e+00 : f32
    %117 = vector.broadcast %cst_58 : f32 to vector<8x1xf32>
    %118 = arith.mulf %116, %117 : vector<8x1xf32>
    %119 = arith.mulf %80, %89 : vector<8x32xf32>
    %cst_59 = arith.constant dense<0.000000e+00> : vector<8xf32>
    %120 = vector.multi_reduction <add>, %119, %cst_59 [1] : vector<8x32xf32> to vector<8xf32>
    %121 = vector.shape_cast %120 : vector<8xf32> to vector<8x1xf32>
    %cst_60 = arith.constant 2.000000e+00 : f32
    %122 = vector.broadcast %cst_60 : f32 to vector<8x1xf32>
    %123 = arith.mulf %121, %122 : vector<8x1xf32>
    %124 = vector.shape_cast %103 : vector<1x8xf32> to vector<1x1x8xf32>
    %cst_61 = arith.constant dense<0.000000e+00> : vector<1xf32>
    %125 = vector.multi_reduction <add>, %124, %cst_61 [1, 2] : vector<1x1x8xf32> to vector<1xf32>
    %126 = vector.shape_cast %125 : vector<1xf32> to vector<1x1x1xf32>
    %127 = vector.extract %126[0, 0, 0] : f32 from vector<1x1x1xf32>
    %128 = vector.shape_cast %118 : vector<8x1xf32> to vector<1x8x1xf32>
    %cst_62 = arith.constant dense<0.000000e+00> : vector<1xf32>
    %129 = vector.multi_reduction <add>, %128, %cst_62 [1, 2] : vector<1x8x1xf32> to vector<1xf32>
    %130 = vector.shape_cast %129 : vector<1xf32> to vector<1x1x1xf32>
    %131 = vector.extract %130[0, 0, 0] : f32 from vector<1x1x1xf32>
    %132 = arith.subf %127, %131 : f32
    %133 = vector.shape_cast %113 : vector<1x8xf32> to vector<1x1x8xf32>
    %cst_63 = arith.constant dense<0.000000e+00> : vector<1xf32>
    %134 = vector.multi_reduction <add>, %133, %cst_63 [1, 2] : vector<1x1x8xf32> to vector<1xf32>
    %135 = vector.shape_cast %134 : vector<1xf32> to vector<1x1x1xf32>
    %136 = vector.extract %135[0, 0, 0] : f32 from vector<1x1x1xf32>
    %137 = vector.shape_cast %123 : vector<8x1xf32> to vector<1x8x1xf32>
    %cst_64 = arith.constant dense<0.000000e+00> : vector<1xf32>
    %138 = vector.multi_reduction <add>, %137, %cst_64 [1, 2] : vector<1x8x1xf32> to vector<1xf32>
    %139 = vector.shape_cast %138 : vector<1xf32> to vector<1x1x1xf32>
    %140 = vector.extract %139[0, 0, 0] : f32 from vector<1x1x1xf32>
    %141 = arith.subf %136, %140 : f32
    %cst_65 = arith.constant 8.000000e-01 : f32
    %142 = arith.mulf %cst_65, %141 : f32
    %143 = arith.addf %132, %142 : f32
    %c0_66 = arith.constant 0 : index
    %c0_67 = arith.constant 0 : index
    %c0_68 = arith.constant 0 : index
    %c0_69 = arith.constant 0 : index
    %144 = vector.load %arg12[%c0_66, %c0_67, %c0_68, %c0_69] : memref<1x2x8x32xf32, #tpu.memory_space<vmem>>, vector<1x1x8x32xf32>
    %145 = vector.shape_cast %144 : vector<1x1x8x32xf32> to vector<8x32xf32>
    %146 = vector.shape_cast %80 : vector<8x32xf32> to vector<1x1x8x32xf32>
    tpu.vector_store %arg12[%c0_66, %c0_67, %c0_68, %c0_69], %146 {strides = array<i32>} : memref<1x2x8x32xf32, #tpu.memory_space<vmem>>, vector<1x1x8x32xf32>,
    %c0_70 = arith.constant 0 : index
    %c1 = arith.constant 1 : index
    %c0_71 = arith.constant 0 : index
    %c0_72 = arith.constant 0 : index
    %147 = vector.load %arg12[%c0_70, %c1, %c0_71, %c0_72] : memref<1x2x8x32xf32, #tpu.memory_space<vmem>>, vector<1x1x8x32xf32>
    %148 = vector.shape_cast %147 : vector<1x1x8x32xf32> to vector<8x32xf32>
    %149 = vector.shape_cast %53 : vector<8x32xf32> to vector<1x1x8x32xf32>
    tpu.vector_store %arg12[%c0_70, %c1, %c0_71, %c0_72], %149 {strides = array<i32>} : memref<1x2x8x32xf32, #tpu.memory_space<vmem>>, vector<1x1x8x32xf32>,
    %cst_73 = arith.constant 1.250000e-01 : f32
    %150 = arith.mulf %143, %cst_73 : f32
    %151 = vector.broadcast %150 : f32 to vector<1x1xf32>
    %c0_74 = arith.constant 0 : index
    %c0_75 = arith.constant 0 : index
    %c0_76 = arith.constant 0 : index
    %152 = vector.load %arg13[%c0_74, %c0_75, %c0_76] : memref<1x1x1xf32, #tpu.memory_space<vmem>>, vector<1x1x1xf32>
    %153 = vector.shape_cast %152 : vector<1x1x1xf32> to vector<1x1xf32>
    %154 = vector.shape_cast %151 : vector<1x1xf32> to vector<1x1x1xf32>
    tpu.vector_store %arg13[%c0_74, %c0_75, %c0_76], %154 {strides = array<i32>} : memref<1x1x1xf32, #tpu.memory_space<vmem>>, vector<1x1x1xf32>,
    return
  }
  func.func @transform_0(%arg0: i32) -> (i32, i32, i32) {
    %c0_i32 = arith.constant 0 : i32
    %c0_i32_0 = arith.constant 0 : i32
    %c0_i32_1 = arith.constant 0 : i32
    return %arg0, %c0_i32, %c0_i32_0 : i32, i32, i32
  }
  func.func @transform_1(%arg0: i32) -> (i32, i32, i32) {
    %c0_i32 = arith.constant 0 : i32
    %c0_i32_0 = arith.constant 0 : i32
    %c0_i32_1 = arith.constant 0 : i32
    return %arg0, %c0_i32, %c0_i32_0 : i32, i32, i32
  }
  func.func @transform_2(%arg0: i32) -> (i32, i32, i32) {
    %c0_i32 = arith.constant 0 : i32
    %c0_i32_0 = arith.constant 0 : i32
    %c0_i32_1 = arith.constant 0 : i32
    return %arg0, %c0_i32, %c0_i32_0 : i32, i32, i32
  }
  func.func @transform_3(%arg0: i32) -> (i32, i32) {
    %c0_i32 = arith.constant 0 : i32
    %c0_i32_0 = arith.constant 0 : i32
    %c0_i32_1 = arith.constant 0 : i32
    return %c0_i32, %c0_i32_0 : i32, i32
  }
  func.func @transform_4(%arg0: i32) -> (i32, i32) {
    %c0_i32 = arith.constant 0 : i32
    %c0_i32_0 = arith.constant 0 : i32
    %c0_i32_1 = arith.constant 0 : i32
    return %c0_i32, %c0_i32_0 : i32, i32
  }
  func.func @transform_5(%arg0: i32) -> (i32, i32) {
    %c0_i32 = arith.constant 0 : i32
    %c0_i32_0 = arith.constant 0 : i32
    %c0_i32_1 = arith.constant 0 : i32
    return %c0_i32, %c0_i32_0 : i32, i32
  }
  func.func @transform_6(%arg0: i32) -> (i32, i32) {
    %c0_i32 = arith.constant 0 : i32
    %c0_i32_0 = arith.constant 0 : i32
    %c0_i32_1 = arith.constant 0 : i32
    return %c0_i32, %c0_i32_0 : i32, i32
  }
  func.func @transform_7(%arg0: i32) -> (i32, i32) {
    %c0_i32 = arith.constant 0 : i32
    %c0_i32_0 = arith.constant 0 : i32
    %c0_i32_1 = arith.constant 0 : i32
    return %c0_i32, %c0_i32_0 : i32, i32
  }
  func.func @transform_8(%arg0: i32) -> (i32, i32) {
    %c0_i32 = arith.constant 0 : i32
    %c0_i32_0 = arith.constant 0 : i32
    %c0_i32_1 = arith.constant 0 : i32
    return %c0_i32, %c0_i32_0 : i32, i32
  }
  func.func @transform_9(%arg0: i32) -> (i32, i32) {
    %c0_i32 = arith.constant 0 : i32
    %c0_i32_0 = arith.constant 0 : i32
    %c0_i32_1 = arith.constant 0 : i32
    return %c0_i32, %c0_i32_0 : i32, i32
  }
  func.func @transform_10(%arg0: i32) -> (i32, i32) {
    %c0_i32 = arith.constant 0 : i32
    %c0_i32_0 = arith.constant 0 : i32
    %c0_i32_1 = arith.constant 0 : i32
    return %c0_i32, %c0_i32_0 : i32, i32
  }
  func.func @transform_11(%arg0: i32) -> (i32, i32, i32, i32) {
    %c0_i32 = arith.constant 0 : i32
    %c0_i32_0 = arith.constant 0 : i32
    %c0_i32_1 = arith.constant 0 : i32
    %c0_i32_2 = arith.constant 0 : i32
    return %arg0, %c0_i32, %c0_i32_0, %c0_i32_1 : i32, i32, i32, i32
  }
  func.func @transform_12(%arg0: i32) -> (i32, i32, i32) {
    %c0_i32 = arith.constant 0 : i32
    %c0_i32_0 = arith.constant 0 : i32
    %c0_i32_1 = arith.constant 0 : i32
    return %arg0, %c0_i32, %c0_i32_0 : i32, i32, i32
  }
}

</mosaic_0001>

<llo_original>
// kernel: tpu_custom_call.1
$region0: #{tpu_custom_call.1}
  #allocation0 [shape = 'u32[]', space=smem, size = 0x4, offset = 0x4, fixed_abs, tag = 'smem constant byte address 0x4 - core index']
  #allocation1 [shape = 'u32[144,128]{1,0:T(1,128)}', space=vmem, size = 0x12000, scoped, tag = 'internal scratch']
  %s0 = inlined_call_operand.vmem [shape: f32[4,16,32], index: 0, kind: input, shape index: {}]
  %s1 = inlined_call_operand.vmem [shape: f32[4,8,16], index: 1, kind: input, shape index: {}]
  %s2 = inlined_call_operand.vmem [shape: f32[4,32,16], index: 2, kind: input, shape index: {}]
  %s3 = inlined_call_operand.hbm [shape: f32[16,32], index: 3, kind: input, shape index: {}]
  %s4 = inlined_call_operand.vmem [shape: f32[1,32], index: 4, kind: input, shape index: {}]
  %s5 = inlined_call_operand.vmem [shape: f32[32,32], index: 5, kind: input, shape index: {}]
  %s6 = inlined_call_operand.vmem [shape: f32[1,32], index: 6, kind: input, shape index: {}]
  %s7 = inlined_call_operand.vmem [shape: f32[32,32], index: 7, kind: input, shape index: {}]
  %s8 = inlined_call_operand.vmem [shape: f32[1,32], index: 8, kind: input, shape index: {}]
  %s9 = inlined_call_operand.vmem [shape: f32[32,32], index: 9, kind: input, shape index: {}]
  %s10 = inlined_call_operand.vmem [shape: f32[1,32], index: 10, kind: input, shape index: {}]
  %s11 = inlined_call_operand.hbm [shape: f32[4,2,8,32], index: 11, kind: output, shape index: {0}]
  %s12 = inlined_call_operand.vmem [shape: f32[4,1,1], index: 12, kind: output, shape index: {1}]
  %13 = xla_tuple %s11, %s12
  %s14 = sld [smem:[#allocation0]]
  $region89: #{tpu_custom_call.1} parent=0
    _
  %s16 = ssub.s32 1, %s14
  %s17 = scalar_select 0, %s16, %s14
  $region1: #{tpu_custom_call.1} parent=0
    #allocation2 [shape = 'u8[8192]{0}', space=vmem, size = 0x2000, scoped, tag = 'input window, operand 3, single buffered']
    #allocation3 [shape = 's32[2]{0}', space=sflag, size = 0x8, scoped, tag = 'scoped memory for tpu_custom_call.1']
    #allocation4 [shape = 's32[2]{0}', space=sflag, size = 0x8, scoped, tag = 'scoped memory for tpu_custom_call.1']
    #allocation5 [shape = 'u8[16384]{0}', space=vmem, size = 0x4000, scoped, tag = 'output window, operand 0']
    %18 = vsyncpa [#allocation3], 0
    %19 = vsyncpa [#allocation4], 0
    %s20 = scalar_lea.sflag [#allocation4], 1
    %21 = vsyncpa %s20, 0
    loop: start=0, step=1, limit=6
    $region2: #{tpu_custom_call.1} parent=1 // loop_pre_header
      _
    $region3: #{tpu_custom_call.1} parent=1 // loop_header
      %s23 = sphi 0, %s27
      %p24 = scmp.ge.s32.totalorder %s23, 6
      %s33 = sphi 0, %s35
      %s36 = sphi 0, %s33
      %s37 = sphi 0, %s36
      %s53 = sphi 0, %s37
      %s59 = sphi 0, %s61
      %s62 = sphi 0, %s59
      %s63 = sphi 0, %s62
      %s79 = sphi 0, %s63
      %s85 = sphi 0, %s87
      %s88 = sphi 0, %s85
      %s89 = sphi 0, %s88
      %s105 = sphi 0, %s89
      %s109 = sphi 0, %s109
      %s111 = sphi 0, %s109
      %s112 = sphi 0, %s111
      %s126 = sphi 0, %s112
      %s130 = sphi 0, %s130
      %s132 = sphi 0, %s130
      %s133 = sphi 0, %s132
      %s147 = sphi 0, %s133
      %s151 = sphi 0, %s151
      %s153 = sphi 0, %s151
      %s154 = sphi 0, %s153
      %s168 = sphi 0, %s154
      %s172 = sphi 0, %s172
      %s174 = sphi 0, %s172
      %s175 = sphi 0, %s174
      %s189 = sphi 0, %s175
      %s193 = sphi 0, %s193
      %s195 = sphi 0, %s193
      %s196 = sphi 0, %s195
      %s210 = sphi 0, %s196
      %s214 = sphi 0, %s214
      %s216 = sphi 0, %s214
      %s217 = sphi 0, %s216
      %s231 = sphi 0, %s217
      %s235 = sphi 0, %s235
      %s237 = sphi 0, %s235
      %s238 = sphi 0, %s237
      %s252 = sphi 0, %s238
      %s256 = sphi 0, %s256
      %s258 = sphi 0, %s256
      %s259 = sphi 0, %s258
      %s273 = sphi 0, %s259
      %s279 = sphi 0, %s281
      %s282 = sphi 0, %s279
      %s283 = sphi 0, %s282
      %s299 = sphi 0, %s283
      %s305 = sphi 0, %s307
      %s308 = sphi 0, %s305
      %s309 = sphi 0, %s308
      %s325 = sphi 0, %s309
    $region4: #{tpu_custom_call.1} parent=1 // loop_header_branch
      %26 = sbr.rel (%p24) target = $region8
    $region5: #{tpu_custom_call.1} parent=1 // loop_body
      %s28 = ssub.s32 %s23, 1
      %s29 = ssub.s32 %s23, 2
      %s30 = sadd.s32 %s23, 1
      %s31 = ssub.s32 %s23, %s30
      %p32 = scmp.eq.s32.totalorder %s31, 0
      %s34 = sadd.s32 %s33, 1
      %s35 = scalar_select %p32, %s33, %s34
      %p38 = pneg %p32
      %p39 = scmp.eq.s32.totalorder %s23, 3
      %p40 = por %p38, %p39
      %p41 = scmp.ne.s32.totalorder %s33, %s36
      %p42 = scmp.eq.s32.totalorder %s23, 0
      %p43 = por %p41, %p42
      %p44 = scmp.ne.s32.totalorder %s33, %s36
      %p45 = scmp.eq.s32.totalorder %s28, 3
      %p46 = por %p44, %p45
      %p47 = scmp.ne.s32.totalorder %s36, %s37
      %p48 = scmp.eq.s32.totalorder %s28, 0
      %p49 = por %p47, %p48
      %p50 = scmp.ne.s32.totalorder %s36, %s37
      %p51 = scmp.eq.s32.totalorder %s29, 3
      %p52 = por %p50, %p51
      %p54 = scmp.ne.s32.totalorder %s37, %s53
      %p55 = scmp.eq.s32.totalorder %s29, 0
      %p56 = por %p54, %p55
      %s57 = ssub.s32 %s23, %s30
      %p58 = scmp.eq.s32.totalorder %s57, 0
      %s60 = sadd.s32 %s59, 1
      %s61 = scalar_select %p58, %s59, %s60
      %p64 = pneg %p58
      %p65 = scmp.eq.s32.totalorder %s23, 3
      %p66 = por %p64, %p65
      %p67 = scmp.ne.s32.totalorder %s59, %s62
      %p68 = scmp.eq.s32.totalorder %s23, 0
      %p69 = por %p67, %p68
      %p70 = scmp.ne.s32.totalorder %s59, %s62
      %p71 = scmp.eq.s32.totalorder %s28, 3
      %p72 = por %p70, %p71
      %p73 = scmp.ne.s32.totalorder %s62, %s63
      %p74 = scmp.eq.s32.totalorder %s28, 0
      %p75 = por %p73, %p74
      %p76 = scmp.ne.s32.totalorder %s62, %s63
      %p77 = scmp.eq.s32.totalorder %s29, 3
      %p78 = por %p76, %p77
      %p80 = scmp.ne.s32.totalorder %s63, %s79
      %p81 = scmp.eq.s32.totalorder %s29, 0
      %p82 = por %p80, %p81
      %s83 = ssub.s32 %s23, %s30
      %p84 = scmp.eq.s32.totalorder %s83, 0
      %s86 = sadd.s32 %s85, 1
      %s87 = scalar_select %p84, %s85, %s86
      %p90 = pneg %p84
      %p91 = scmp.eq.s32.totalorder %s23, 3
      %p92 = por %p90, %p91
      %p93 = scmp.ne.s32.totalorder %s85, %s88
      %p94 = scmp.eq.s32.totalorder %s23, 0
      %p95 = por %p93, %p94
      %p96 = scmp.ne.s32.totalorder %s85, %s88
      %p97 = scmp.eq.s32.totalorder %s28, 3
      %p98 = por %p96, %p97
      %p99 = scmp.ne.s32.totalorder %s88, %s89
      %p100 = scmp.eq.s32.totalorder %s28, 0
      %p101 = por %p99, %p100
      %p102 = scmp.ne.s32.totalorder %s88, %s89
      %p103 = scmp.eq.s32.totalorder %s29, 3
      %p104 = por %p102, %p103
      %p106 = scmp.ne.s32.totalorder %s89, %s105
      %p107 = scmp.eq.s32.totalorder %s29, 0
      %p108 = por %p106, %p107
      %s110 = sadd.s32 %s109, 1
      %p113 = scmp.eq.s32.totalorder %s23, 3
      %p114 = scmp.ne.s32.totalorder %s109, %s111
      %p115 = scmp.eq.s32.totalorder %s23, 0
      %p116 = por %p114, %p115
      %p117 = scmp.ne.s32.totalorder %s109, %s111
      %p118 = scmp.eq.s32.totalorder %s28, 3
      %p119 = por %p117, %p118
      %p120 = scmp.ne.s32.totalorder %s111, %s112
      %p121 = scmp.eq.s32.totalorder %s28, 0
      %p122 = por %p120, %p121
      %p123 = scmp.ne.s32.totalorder %s111, %s112
      %p124 = scmp.eq.s32.totalorder %s29, 3
      %p125 = por %p123, %p124
      %p127 = scmp.ne.s32.totalorder %s112, %s126
      %p128 = scmp.eq.s32.totalorder %s29, 0
      %p129 = por %p127, %p128
      %s131 = sadd.s32 %s130, 1
      %p134 = scmp.eq.s32.totalorder %s23, 3
      %p135 = scmp.ne.s32.totalorder %s130, %s132
      %p136 = scmp.eq.s32.totalorder %s23, 0
      %p137 = por %p135, %p136
      %p138 = scmp.ne.s32.totalorder %s130, %s132
      %p139 = scmp.eq.s32.totalorder %s28, 3
      %p140 = por %p138, %p139
      %p141 = scmp.ne.s32.totalorder %s132, %s133
      %p142 = scmp.eq.s32.totalorder %s28, 0
      %p143 = por %p141, %p142
      %p144 = scmp.ne.s32.totalorder %s132, %s133
      %p145 = scmp.eq.s32.totalorder %s29, 3
      %p146 = por %p144, %p145
      %p148 = scmp.ne.s32.totalorder %s133, %s147
      %p149 = scmp.eq.s32.totalorder %s29, 0
      %p150 = por %p148, %p149
      %s152 = sadd.s32 %s151, 1
      %p155 = scmp.eq.s32.totalorder %s23, 3
      %p156 = scmp.ne.s32.totalorder %s151, %s153
      %p157 = scmp.eq.s32.totalorder %s23, 0
      %p158 = por %p156, %p157
      %p159 = scmp.ne.s32.totalorder %s151, %s153
      %p160 = scmp.eq.s32.totalorder %s28, 3
      %p161 = por %p159, %p160
      %p162 = scmp.ne.s32.totalorder %s153, %s154
      %p163 = scmp.eq.s32.totalorder %s28, 0
      %p164 = por %p162, %p163
      %p165 = scmp.ne.s32.totalorder %s153, %s154
      %p166 = scmp.eq.s32.totalorder %s29, 3
      %p167 = por %p165, %p166
      %p169 = scmp.ne.s32.totalorder %s154, %s168
      %p170 = scmp.eq.s32.totalorder %s29, 0
      %p171 = por %p169, %p170
      %s173 = sadd.s32 %s172, 1
      %p176 = scmp.eq.s32.totalorder %s23, 3
      %p177 = scmp.ne.s32.totalorder %s172, %s174
      %p178 = scmp.eq.s32.totalorder %s23, 0
      %p179 = por %p177, %p178
      %p180 = scmp.ne.s32.totalorder %s172, %s174
      %p181 = scmp.eq.s32.totalorder %s28, 3
      %p182 = por %p180, %p181
      %p183 = scmp.ne.s32.totalorder %s174, %s175
      %p184 = scmp.eq.s32.totalorder %s28, 0
      %p185 = por %p183, %p184
      %p186 = scmp.ne.s32.totalorder %s174, %s175
      %p187 = scmp.eq.s32.totalorder %s29, 3
      %p188 = por %p186, %p187
      %p190 = scmp.ne.s32.totalorder %s175, %s189
      %p191 = scmp.eq.s32.totalorder %s29, 0
      %p192 = por %p190, %p191
      %s194 = sadd.s32 %s193, 1
      %p197 = scmp.eq.s32.totalorder %s23, 3
      %p198 = scmp.ne.s32.totalorder %s193, %s195
      %p199 = scmp.eq.s32.totalorder %s23, 0
      %p200 = por %p198, %p199
      %p201 = scmp.ne.s32.totalorder %s193, %s195
      %p202 = scmp.eq.s32.totalorder %s28, 3
      %p203 = por %p201, %p202
      %p204 = scmp.ne.s32.totalorder %s195, %s196
      %p205 = scmp.eq.s32.totalorder %s28, 0
      %p206 = por %p204, %p205
      %p207 = scmp.ne.s32.totalorder %s195, %s196
      %p208 = scmp.eq.s32.totalorder %s29, 3
      %p209 = por %p207, %p208
      %p211 = scmp.ne.s32.totalorder %s196, %s210
      %p212 = scmp.eq.s32.totalorder %s29, 0
      %p213 = por %p211, %p212
      %s215 = sadd.s32 %s214, 1
      %p218 = scmp.eq.s32.totalorder %s23, 3
      %p219 = scmp.ne.s32.totalorder %s214, %s216
      %p220 = scmp.eq.s32.totalorder %s23, 0
      %p221 = por %p219, %p220
      %p222 = scmp.ne.s32.totalorder %s214, %s216
      %p223 = scmp.eq.s32.totalorder %s28, 3
      %p224 = por %p222, %p223
      %p225 = scmp.ne.s32.totalorder %s216, %s217
      %p226 = scmp.eq.s32.totalorder %s28, 0
      %p227 = por %p225, %p226
      %p228 = scmp.ne.s32.totalorder %s216, %s217
      %p229 = scmp.eq.s32.totalorder %s29, 3
      %p230 = por %p228, %p229
      %p232 = scmp.ne.s32.totalorder %s217, %s231
      %p233 = scmp.eq.s32.totalorder %s29, 0
      %p234 = por %p232, %p233
      %s236 = sadd.s32 %s235, 1
      %p239 = scmp.eq.s32.totalorder %s23, 3
      %p240 = scmp.ne.s32.totalorder %s235, %s237
      %p241 = scmp.eq.s32.totalorder %s23, 0
      %p242 = por %p240, %p241
      %p243 = scmp.ne.s32.totalorder %s235, %s237
      %p244 = scmp.eq.s32.totalorder %s28, 3
      %p245 = por %p243, %p244
      %p246 = scmp.ne.s32.totalorder %s237, %s238
      %p247 = scmp.eq.s32.totalorder %s28, 0
      %p248 = por %p246, %p247
      %p249 = scmp.ne.s32.totalorder %s237, %s238
      %p250 = scmp.eq.s32.totalorder %s29, 3
      %p251 = por %p249, %p250
      %p253 = scmp.ne.s32.totalorder %s238, %s252
      %p254 = scmp.eq.s32.totalorder %s29, 0
      %p255 = por %p253, %p254
      %s257 = sadd.s32 %s256, 1
      %p260 = scmp.eq.s32.totalorder %s23, 3
      %p261 = scmp.ne.s32.totalorder %s256, %s258
      %p262 = scmp.eq.s32.totalorder %s23, 0
      %p263 = por %p261, %p262
      %p264 = scmp.ne.s32.totalorder %s256, %s258
      %p265 = scmp.eq.s32.totalorder %s28, 3
      %p266 = por %p264, %p265
      %p267 = scmp.ne.s32.totalorder %s258, %s259
      %p268 = scmp.eq.s32.totalorder %s28, 0
      %p269 = por %p267, %p268
      %p270 = scmp.ne.s32.totalorder %s258, %s259
      %p271 = scmp.eq.s32.totalorder %s29, 3
      %p272 = por %p270, %p271
      %p274 = scmp.ne.s32.totalorder %s259, %s273
      %p275 = scmp.eq.s32.totalorder %s29, 0
      %p276 = por %p274, %p275
      %s277 = ssub.s32 %s23, %s30
      %p278 = scmp.eq.s32.totalorder %s277, 0
      %s280 = sadd.s32 %s279, 1
      %s281 = scalar_select %p278, %s279, %s280
      %p284 = pneg %p278
      %p285 = scmp.eq.s32.totalorder %s23, 3
      %p286 = por %p284, %p285
      %p287 = scmp.ne.s32.totalorder %s279, %s282
      %p288 = scmp.eq.s32.totalorder %s23, 0
      %p289 = por %p287, %p288
      %p290 = scmp.ne.s32.totalorder %s279, %s282
      %p291 = scmp.eq.s32.totalorder %s28, 3
      %p292 = por %p290, %p291
      %p293 = scmp.ne.s32.totalorder %s282, %s283
      %p294 = scmp.eq.s32.totalorder %s28, 0
      %p295 = por %p293, %p294
      %p296 = scmp.ne.s32.totalorder %s282, %s283
      %p297 = scmp.eq.s32.totalorder %s29, 3
      %p298 = por %p296, %p297
      %p300 = scmp.ne.s32.totalorder %s283, %s299
      %p301 = scmp.eq.s32.totalorder %s29, 0
      %p302 = por %p300, %p301
      %s303 = ssub.s32 %s23, %s30
      %p304 = scmp.eq.s32.totalorder %s303, 0
      %s306 = sadd.s32 %s305, 1
      %s307 = scalar_select %p304, %s305, %s306
      %p310 = pneg %p304
      %p311 = scmp.eq.s32.totalorder %s23, 3
      %p312 = por %p310, %p311
      %p313 = scmp.ne.s32.totalorder %s305, %s308
      %p314 = scmp.eq.s32.totalorder %s23, 0
      %p315 = por %p313, %p314
      %p316 = scmp.ne.s32.totalorder %s305, %s308
      %p317 = scmp.eq.s32.totalorder %s28, 3
      %p318 = por %p316, %p317
      %p319 = scmp.ne.s32.totalorder %s308, %s309
      %p320 = scmp.eq.s32.totalorder %s28, 0
      %p321 = por %p319, %p320
      %p322 = scmp.ne.s32.totalorder %s308, %s309
      %p323 = scmp.eq.s32.totalorder %s29, 3
      %p324 = por %p322, %p323
      %p326 = scmp.ne.s32.totalorder %s309, %s325
      %p327 = scmp.eq.s32.totalorder %s29, 0
      %p328 = por %p326, %p327
      %p329 = scmp.le.s32.totalorder 1, %s23
      %p330 = scmp.lt.s32.totalorder %s23, 5
      %p331 = pnand %p329, %p330
      %p332 = pneg %p331
      // Predicated region
      $region9: #{tpu_custom_call.1} parent=5 // pred_check
        _
      $region10: #{tpu_custom_call.1} parent=5 // pred_check_branch
        %334 = sbr.rel (%p331) target = $region12
      $region11: #{tpu_custom_call.1} parent=5 // pred_region
        %s335 = ssub.s32 %s23, 1
        // Predicated region
        $region13: #{tpu_custom_call.1} parent=11 // pred_check
          %p336 = pneg %p122
        $region14: #{tpu_custom_call.1} parent=11 // pred_check_branch
          %338 = sbr.rel (%p336) target = $region16
        $region15: #{tpu_custom_call.1} parent=11 // pred_region
          %s340 = ssub.s32 256, 256
          %341 = vsyncadd [#allocation3], %s340
          %s342 = sshll.u32 [#allocation2], 4
          %s343 = int_to_ptr.vmem [resolvable:$true] %s342
          %348 = dma.hbm_to_vmem [thread:$0]  %s3, 256, %s343, [#allocation3], 128, 128, 8
        $region16: #{tpu_custom_call.1} parent=11 // pred_fallthru
          _
        // Predicated region
        $region17: #{tpu_custom_call.1} parent=11 // pred_check
          %p349 = pneg %p143
        $region18: #{tpu_custom_call.1} parent=11 // pred_check_branch
          %351 = sbr.rel (%p349) target = $region20
        $region19: #{tpu_custom_call.1} parent=11 // pred_region
          _
        $region20: #{tpu_custom_call.1} parent=11 // pred_fallthru
          _
        // Predicated region
        $region21: #{tpu_custom_call.1} parent=11 // pred_check
          %p352 = pneg %p164
        $region22: #{tpu_custom_call.1} parent=11 // pred_check_branch
          %354 = sbr.rel (%p352) target = $region24
        $region23: #{tpu_custom_call.1} parent=11 // pred_region
          _
        $region24: #{tpu_custom_call.1} parent=11 // pred_fallthru
          _
        // Predicated region
        $region25: #{tpu_custom_call.1} parent=11 // pred_check
          %p355 = pneg %p185
        $region26: #{tpu_custom_call.1} parent=11 // pred_check_branch
          %357 = sbr.rel (%p355) target = $region28
        $region27: #{tpu_custom_call.1} parent=11 // pred_region
          _
        $region28: #{tpu_custom_call.1} parent=11 // pred_fallthru
          _
        // Predicated region
        $region29: #{tpu_custom_call.1} parent=11 // pred_check
          %p358 = pneg %p206
        $region30: #{tpu_custom_call.1} parent=11 // pred_check_branch
          %360 = sbr.rel (%p358) target = $region32
        $region31: #{tpu_custom_call.1} parent=11 // pred_region
          _
        $region32: #{tpu_custom_call.1} parent=11 // pred_fallthru
          _
        // Predicated region
        $region33: #{tpu_custom_call.1} parent=11 // pred_check
          %p361 = pneg %p227
        $region34: #{tpu_custom_call.1} parent=11 // pred_check_branch
          %363 = sbr.rel (%p361) target = $region36
        $region35: #{tpu_custom_call.1} parent=11 // pred_region
          _
        $region36: #{tpu_custom_call.1} parent=11 // pred_fallthru
          _
        // Predicated region
        $region37: #{tpu_custom_call.1} parent=11 // pred_check
          %p364 = pneg %p248
        $region38: #{tpu_custom_call.1} parent=11 // pred_check_branch
          %366 = sbr.rel (%p364) target = $region40
        $region39: #{tpu_custom_call.1} parent=11 // pred_region
          _
        $region40: #{tpu_custom_call.1} parent=11 // pred_fallthru
          _
        // Predicated region
        $region41: #{tpu_custom_call.1} parent=11 // pred_check
          %p367 = pneg %p269
        $region42: #{tpu_custom_call.1} parent=11 // pred_check_branch
          %369 = sbr.rel (%p367) target = $region44
        $region43: #{tpu_custom_call.1} parent=11 // pred_region
          _
        $region44: #{tpu_custom_call.1} parent=11 // pred_fallthru
          _
      $region12: #{tpu_custom_call.1} parent=5 // pred_fallthru
        _
      %p370 = scmp.lt.s32.totalorder %s23, 4
      // Predicated region
      $region45: #{tpu_custom_call.1} parent=5 // pred_check
        %p371 = pneg %p370
      $region46: #{tpu_custom_call.1} parent=5 // pred_check_branch
        %373 = sbr.rel (%p371) target = $region48
      $region47: #{tpu_custom_call.1} parent=5 // pred_region
        // Predicated region
        $region49: #{tpu_custom_call.1} parent=47 // pred_check
          %p374 = pneg %p43
        $region50: #{tpu_custom_call.1} parent=47 // pred_check_branch
          %376 = sbr.rel (%p374) target = $region52
        $region51: #{tpu_custom_call.1} parent=47 // pred_region
          %p377 = scmp.lt.s32.totalorder %s23, 3
          %s378 = scalar_select %p377, %s23, 3
          %s379 = smul.addr %s378, 2
          %s380 = smul.addr %s379, 8
          %s381 = scalar_lea.vmem %s0, %s380
        $region52: #{tpu_custom_call.1} parent=47 // pred_fallthru
          _
        // Predicated region
        $region53: #{tpu_custom_call.1} parent=47 // pred_check
          %p382 = pneg %p69
        $region54: #{tpu_custom_call.1} parent=47 // pred_check_branch
          %384 = sbr.rel (%p382) target = $region56
        $region55: #{tpu_custom_call.1} parent=47 // pred_region
          %p385 = scmp.lt.s32.totalorder %s23, 3
          %s386 = scalar_select %p385, %s23, 3
          %s387 = smul.addr %s386, 8
          %s388 = scalar_lea.vmem %s1, %s387
        $region56: #{tpu_custom_call.1} parent=47 // pred_fallthru
          _
        // Predicated region
        $region57: #{tpu_custom_call.1} parent=47 // pred_check
          %p389 = pneg %p95
        $region58: #{tpu_custom_call.1} parent=47 // pred_check_branch
          %391 = sbr.rel (%p389) target = $region60
        $region59: #{tpu_custom_call.1} parent=47 // pred_region
          %p392 = scmp.lt.s32.totalorder %s23, 3
          %s393 = scalar_select %p392, %s23, 3
          %s394 = smul.addr %s393, 4
          %s395 = smul.addr %s394, 8
          %s396 = scalar_lea.vmem %s2, %s395
        $region60: #{tpu_custom_call.1} parent=47 // pred_fallthru
          _
      $region48: #{tpu_custom_call.1} parent=5 // pred_fallthru
        _
      %p397 = scmp.le.s32.totalorder 1, %s23
      %p398 = scmp.lt.s32.totalorder %s23, 5
      %p399 = pnand %p397, %p398
      %p400 = pneg %p399
      // Predicated region
      $region61: #{tpu_custom_call.1} parent=5 // pred_check
        _
      $region62: #{tpu_custom_call.1} parent=5 // pred_check_branch
        %402 = sbr.rel (%p399) target = $region64
      $region63: #{tpu_custom_call.1} parent=5 // pred_region
        %s403 = ssub.s32 %s23, 1
        // Predicated region
        $region65: #{tpu_custom_call.1} parent=63 // pred_check
          %p404 = pneg %p122
        $region66: #{tpu_custom_call.1} parent=63 // pred_check_branch
          %406 = sbr.rel (%p404) target = $region68
        $region67: #{tpu_custom_call.1} parent=63 // pred_region
          %407 = dma.done [#allocation3], 256
        $region68: #{tpu_custom_call.1} parent=63 // pred_fallthru
          _
        %p408 = scmp.lt.s32.totalorder %s28, 3
        %s409 = scalar_select %p408, %s28, 3
        %s410 = smul.addr %s409, 2
        %s411 = smul.addr %s410, 8
        %s412 = scalar_lea.vmem %s0, %s411
        %p413 = pneg %p49
        %p414 = pneg %p46
        %p415 = scmp.lt.s32.totalorder %s28, 3
        %s416 = scalar_select %p415, %s28, 3
        %s417 = smul.addr %s416, 8
        %s418 = scalar_lea.vmem %s1, %s417
        %p419 = pneg %p75
        %p420 = pneg %p72
        %p421 = scmp.lt.s32.totalorder %s28, 3
        %s422 = scalar_select %p421, %s28, 3
        %s423 = smul.addr %s422, 4
        %s424 = smul.addr %s423, 8
        %s425 = scalar_lea.vmem %s2, %s424
        %p426 = pneg %p101
        %p427 = pneg %p98
        %p428 = pneg %p122
        %p429 = pneg %p119
        %p430 = pneg %p143
        %p431 = pneg %p140
        %p432 = pneg %p164
        %p433 = pneg %p161
        %p434 = pneg %p185
        %p435 = pneg %p182
        %p436 = pneg %p206
        %p437 = pneg %p203
        %p438 = pneg %p227
        %p439 = pneg %p224
        %p440 = pneg %p248
        %p441 = pneg %p245
        %p442 = pneg %p269
        %p443 = pneg %p266
        %p444 = pneg %p295
        %p445 = pneg %p292
        %s446 = sand.u32 %s282, 1
        %s447 = scalar_lea.sflag [#allocation4], %s446
        %s448 = sand.u32 %s282, 1
        %s449 = smul.addr %s448, 16
        %s450 = scalar_lea.vmem [#allocation5], %s449
        %p451 = pneg %p321
        %p452 = pneg %p318
        %p453 = scmp.lt.s32.totalorder %s28, 3
        %s454 = scalar_select %p453, %s28, 3
        %s455 = scalar_lea.vmem %s12, %s454
        %p456 = scmp.lt.s32.totalorder %s28, 3
        %s457 = scalar_select %p456, %s28, 3
        %s458 = smul.addr %s457, 2
        %s459 = smul.addr %s458, 8
        %s460 = scalar_lea.vmem %s0, %s459
        %p461 = scmp.lt.s32.totalorder %s28, 3
        %s462 = scalar_select %p461, %s28, 3
        %s463 = smul.addr %s462, 8
        %s464 = scalar_lea.vmem %s1, %s463
        %p465 = scmp.lt.s32.totalorder %s28, 3
        %s466 = scalar_select %p465, %s28, 3
        %s467 = smul.addr %s466, 4
        %s468 = smul.addr %s467, 8
        %s469 = scalar_lea.vmem %s2, %s468
        %p470 = scmp.lt.s32.totalorder %s28, 3
        %s471 = scalar_select %p470, %s28, 3
        %s472 = scalar_lea.vmem %s12, %s471
        %v473 = vld [vmem:[%s460] sm:$0xff]
        %v474 = vld [vmem:[%s460 + $0x8] sm:$0xff]
        %v475 = vld [vmem:[%s464] sm:$0xff]
        %v476 = vld [vmem:[%s469] sm:$0xff]
        %v477 = vld [vmem:[%s469 + $0x8] sm:$0xff]
        %v478 = vld [vmem:[%s469 + $0x10] sm:$0xff]
        %v479 = vld [vmem:[%s469 + $0x18] sm:$0xff]
        %vm480 = vcmask 261120
        %v481 = vsel %vm480, %v473, 0.0
        %482 = vadd.xlane.f32.xlu0 %v481
        %v483 = vpop.xlane.xlu0 %482
        %v484 = vsel %vm480, %v474, 0.0
        %485 = vadd.xlane.f32.xlu0 %v484
        %v486 = vpop.xlane.xlu0 %485
        %v487 = vmax.f32 %v483, 1.0
        %v488 = vmax.f32 %v486, 1.0
        %v489 = vadd.f32 %v481, %v484
        %v490 = vrot.slane %v489, 4
        %v491 = vadd.f32 %v489, %v490
        %v492 = vrot.slane %v491, 2
        %v493 = vadd.f32 %v491, %v492
        %v494 = vrot.slane %v493, 1
        %v495 = vadd.f32 %v493, %v494
        %v496 = vmax.f32 %v495, 1.0
        %v497 = vrsqrt.pop %v487
        %v498 = vrsqrt.pop %v488
        %v499 = vmul.f32 %v473, %v497
        %v500 = vmul.f32 %v474, %v498
        %v501 = vrsqrt.pop %v496
        %v502 = vmul.f32 %v499, %v501
        %v503 = vmul.f32 %v500, %v501
        %vm504 = vcmask 130048
        %v505 = vsel %vm504, %v475, 0.0
        %506 = vadd.xlane.f32.xlu0 %v505
        %v507 = vpop.xlane.xlu0 %506
        %v508 = vmax.f32 %v507, 1.0
        %v509 = vrot.slane %v505, 4
        %v510 = vadd.f32 %v505, %v509
        %v511 = vrot.slane %v510, 2
        %v512 = vadd.f32 %v510, %v511
        %v513 = vrot.slane %v512, 1
        %v514 = vadd.f32 %v512, %v513
        %v515 = vmax.f32 %v514, 1.0
        %v516 = vrsqrt.pop %v508
        %v517 = vmul.f32 %v475, %v516
        %v518 = vrsqrt.pop %v515
        %v519 = vmul.f32 %v517, %v518
        %v520 = vld [vmem:[#allocation2] sm:$0xff]
        %v521 = vld [vmem:[#allocation2 + $0x8] sm:$0xff]
        %v523 = vsel %vm504, %v476, 0
        %v526 = vsel %vm504, %v477, 0
        %v529 = vsel %vm504, %v478, 0
        %v532 = vsel %vm504, %v479, 0
        %534 = vmatprep.subr.mxu0 0.0
        %535 = vmatpush1.msra.mxu0 %v520
        %536 = vmatprep.subr.mxu0 0.0
        %537 = vmatpush1.msra.mxu0 %v521
        %538 = vmatprep.subr.mxu0 0.0
        %539 = vmatpush1.msra.mxu0 0.0
        %540 = vmatprep.subr.mxu0 0.0
        %541 = vmatpush1.msra.mxu0 0.0
        %542 = vmatprep.subr.mxu0 0.0
        %543 = vmatpush1.msra.mxu0 0.0
        %544 = vmatprep.subr.mxu0 0.0
        %545 = vmatpush1.msra.mxu0 0.0
        %546 = vmatprep.subr.mxu0 0.0
        %547 = vmatpush1.msra.mxu0 0.0
        %548 = vmatprep.subr.mxu0 0.0
        %549 = vmatpush1.msra.mxu0 0.0
        %550 = vmatprep.subr.mxu0 0.0
        %551 = vmatpush1.msra.mxu0 0.0
        %552 = vmatprep.subr.mxu0 0.0
        %553 = vmatpush1.msra.mxu0 0.0
        %554 = vmatprep.subr.mxu0 0.0
        %555 = vmatpush1.msra.mxu0 0.0
        %556 = vmatprep.subr.mxu0 0.0
        %557 = vmatpush1.msra.mxu0 0.0
        %558 = vmatprep.subr.mxu0 0.0
        %559 = vmatpush1.msra.mxu0 0.0
        %560 = vmatprep.subr.mxu0 0.0
        %561 = vmatpush1.msra.mxu0 0.0
        %562 = vmatprep.subr.mxu0 0.0
        %563 = vmatpush1.msra.mxu0 0.0
        %564 = vmatprep.subr.mxu0 0.0
        %565 = vmatpush1.msra.mxu0 0.0
        %566 = vmatprep.subr.mxu0 0.0
        %567 = vmatpush1.msra.mxu0 0.0
        %568 = vmatprep.subr.mxu0 0.0
        %569 = vmatpush1.msra.mxu0 0.0
        %570 = vmatprep.subr.mxu0 0.0
        %571 = vmatpush1.msra.mxu0 0.0
        %572 = vmatprep.subr.mxu0 0.0
        %573 = vmatpush1.msra.mxu0 0.0
        %574 = vmatprep.subr.mxu0 0.0
        %575 = vmatpush1.msra.mxu0 0.0
        %576 = vmatprep.subr.mxu0 0.0
        %577 = vmatpush1.msra.mxu0 0.0
        %578 = vmatprep.subr.mxu0 0.0
        %579 = vmatpush1.msra.mxu0 0.0
        %580 = vmatprep.subr.mxu0 0.0
        %581 = vmatpush1.msra.mxu0 0.0
        %582 = vmatprep.subr.mxu0 0.0
        %583 = vmatpush1.msra.mxu0 0.0
        %584 = vmatprep.subr.mxu0 0.0
        %585 = vmatpush1.msra.mxu0 0.0
        %586 = vmatprep.subr.mxu0 0.0
        %587 = vmatpush1.msra.mxu0 0.0
        %588 = vmatprep.subr.mxu0 0.0
        %589 = vmatpush1.msra.mxu0 0.0
        %590 = vmatprep.subr.mxu0 0.0
        %591 = vmatpush1.msra.mxu0 0.0
        %592 = vmatprep.subr.mxu0 0.0
        %593 = vmatpush1.msra.mxu0 0.0
        %594 = vmatprep.subr.mxu0 0.0
        %595 = vmatpush1.msra.mxu0 0.0
        %596 = vmatprep.subr.mxu0 0.0
        %597 = vmatpush1.msra.mxu0 0.0
        %598 = vmatprep.mubr.f32.mxu0 0.0
        %599 = vmatmul.mubr.f32.gmra.mrb[0].mxu0 %v523
        %v600 = vpop.f32.mrb[0].mxu0
        %v601 = vadd.f32 0.0, %v600
        %v602 = vpop.f32.mrb[0].mxu0
        %603 = vmatprep.mubr.f32.mxu0 0.0
        %604 = vmatmul.mubr.f32.gmra.mrb[0].mxu0 %v526
        %v605 = vpop.f32.mrb[0].mxu0
        %v606 = vadd.f32 0.0, %v605
        %v607 = vpop.f32.mrb[0].mxu0
        %608 = vmatprep.mubr.f32.mxu0 0.0
        %609 = vmatmul.mubr.f32.gmra.mrb[0].mxu0 %v529
        %v610 = vpop.f32.mrb[0].mxu0
        %v611 = vadd.f32 0.0, %v610
        %v612 = vpop.f32.mrb[0].mxu0
        %613 = vmatprep.mubr.f32.mxu0 0.0
        %614 = vmatmul.mubr.f32.gmra.mrb[0].mxu0 %v532
        %v615 = vpop.f32.mrb[0].mxu0
        %v616 = vadd.f32 0.0, %v615
        %v617 = vpop.f32.mrb[0].mxu0
        %618 = vdwg.mxu0
        %v619 = vld [vmem:[%s4] sm:$0x1]
        %v621 = vlaneseq
        %v622 = vshrl.u32 %v621, 7
        %v623 = vsub.s32 0, %v622
        %v624 = vrot.slane %v619, %v623
        %v627 = vsel %vm480, %v502, 0
        %v630 = vsel %vm480, %v503, 0
        %632 = vmatprep.subr.mxu0 0.0
        %633 = vmatpush1.msra.mxu0 %v601
        %634 = vmatprep.subr.mxu0 0.0
        %635 = vmatpush1.msra.mxu0 %v606
        %636 = vmatprep.subr.mxu0 0.0
        %637 = vmatpush1.msra.mxu0 %v611
        %638 = vmatprep.subr.mxu0 0.0
        %639 = vmatpush1.msra.mxu0 %v616
        %640 = vmatprep.subr.mxu0 0.0
        %641 = vmatpush1.msra.mxu0 0.0
        %642 = vmatprep.subr.mxu0 0.0
        %643 = vmatpush1.msra.mxu0 0.0
        %644 = vmatprep.subr.mxu0 0.0
        %645 = vmatpush1.msra.mxu0 0.0
        %646 = vmatprep.subr.mxu0 0.0
        %647 = vmatpush1.msra.mxu0 0.0
        %648 = vmatprep.subr.mxu0 0.0
        %649 = vmatpush1.msra.mxu0 0.0
        %650 = vmatprep.subr.mxu0 0.0
        %651 = vmatpush1.msra.mxu0 0.0
        %652 = vmatprep.subr.mxu0 0.0
        %653 = vmatpush1.msra.mxu0 0.0
        %654 = vmatprep.subr.mxu0 0.0
        %655 = vmatpush1.msra.mxu0 0.0
        %656 = vmatprep.subr.mxu0 0.0
        %657 = vmatpush1.msra.mxu0 0.0
        %658 = vmatprep.subr.mxu0 0.0
        %659 = vmatpush1.msra.mxu0 0.0
        %660 = vmatprep.subr.mxu0 0.0
        %661 = vmatpush1.msra.mxu0 0.0
        %662 = vmatprep.subr.mxu0 0.0
        %663 = vmatpush1.msra.mxu0 0.0
        %664 = vmatprep.subr.mxu0 0.0
        %665 = vmatpush1.msra.mxu0 0.0
        %666 = vmatprep.subr.mxu0 0.0
        %667 = vmatpush1.msra.mxu0 0.0
        %668 = vmatprep.subr.mxu0 0.0
        %669 = vmatpush1.msra.mxu0 0.0
        %670 = vmatprep.subr.mxu0 0.0
        %671 = vmatpush1.msra.mxu0 0.0
        %672 = vmatprep.subr.mxu0 0.0
        %673 = vmatpush1.msra.mxu0 0.0
        %674 = vmatprep.subr.mxu0 0.0
        %675 = vmatpush1.msra.mxu0 0.0
        %676 = vmatprep.subr.mxu0 0.0
        %677 = vmatpush1.msra.mxu0 0.0
        %678 = vmatprep.subr.mxu0 0.0
        %679 = vmatpush1.msra.mxu0 0.0
        %680 = vmatprep.subr.mxu0 0.0
        %681 = vmatpush1.msra.mxu0 0.0
        %682 = vmatprep.subr.mxu0 0.0
        %683 = vmatpush1.msra.mxu0 0.0
        %684 = vmatprep.subr.mxu0 0.0
        %685 = vmatpush1.msra.mxu0 0.0
        %686 = vmatprep.subr.mxu0 0.0
        %687 = vmatpush1.msra.mxu0 0.0
        %688 = vmatprep.subr.mxu0 0.0
        %689 = vmatpush1.msra.mxu0 0.0
        %690 = vmatprep.subr.mxu0 0.0
        %691 = vmatpush1.msra.mxu0 0.0
        %692 = vmatprep.subr.mxu0 0.0
        %693 = vmatpush1.msra.mxu0 0.0
        %694 = vmatprep.subr.mxu0 0.0
        %695 = vmatpush1.msra.mxu0 0.0
        %696 = vmatprep.mubr.f32.mxu0 0.0
        %697 = vmatmul.mubr.f32.gmra.mrb[0].mxu0 %v627
        %v698 = vpop.f32.mrb[0].mxu0
        %v699 = vadd.f32 %v624, %v698
        %v700 = vpop.f32.mrb[0].mxu0
        %701 = vmatprep.mubr.f32.mxu0 0.0
        %702 = vmatmul.mubr.f32.gmra.mrb[0].mxu0 %v630
        %v703 = vpop.f32.mrb[0].mxu0
        %v704 = vadd.f32 %v624, %v703
        %v705 = vpop.f32.mrb[0].mxu0
        %706 = vdwg.mxu0
        %v707 = vld [vmem:[%s5] sm:$0xff]
        %v708 = vld [vmem:[%s5 + $0x8] sm:$0xff]
        %v709 = vld [vmem:[%s5 + $0x10] sm:$0xff]
        %v710 = vld [vmem:[%s5 + $0x18] sm:$0xff]
        %v712 = vsel %vm480, %v699, 0
        %v715 = vsel %vm480, %v704, 0
        %717 = vmatprep.subr.mxu0 0.0
        %718 = vmatpush1.msra.mxu0 %v707
        %719 = vmatprep.subr.mxu0 0.0
        %720 = vmatpush1.msra.mxu0 %v708
        %721 = vmatprep.subr.mxu0 0.0
        %722 = vmatpush1.msra.mxu0 %v709
        %723 = vmatprep.subr.mxu0 0.0
        %724 = vmatpush1.msra.mxu0 %v710
        %725 = vmatprep.subr.mxu0 0.0
        %726 = vmatpush1.msra.mxu0 0.0
        %727 = vmatprep.subr.mxu0 0.0
        %728 = vmatpush1.msra.mxu0 0.0
        %729 = vmatprep.subr.mxu0 0.0
        %730 = vmatpush1.msra.mxu0 0.0
        %731 = vmatprep.subr.mxu0 0.0
        %732 = vmatpush1.msra.mxu0 0.0
        %733 = vmatprep.subr.mxu0 0.0
        %734 = vmatpush1.msra.mxu0 0.0
        %735 = vmatprep.subr.mxu0 0.0
        %736 = vmatpush1.msra.mxu0 0.0
        %737 = vmatprep.subr.mxu0 0.0
        %738 = vmatpush1.msra.mxu0 0.0
        %739 = vmatprep.subr.mxu0 0.0
        %740 = vmatpush1.msra.mxu0 0.0
        %741 = vmatprep.subr.mxu0 0.0
        %742 = vmatpush1.msra.mxu0 0.0
        %743 = vmatprep.subr.mxu0 0.0
        %744 = vmatpush1.msra.mxu0 0.0
        %745 = vmatprep.subr.mxu0 0.0
        %746 = vmatpush1.msra.mxu0 0.0
        %747 = vmatprep.subr.mxu0 0.0
        %748 = vmatpush1.msra.mxu0 0.0
        %749 = vmatprep.subr.mxu0 0.0
        %750 = vmatpush1.msra.mxu0 0.0
        %751 = vmatprep.subr.mxu0 0.0
        %752 = vmatpush1.msra.mxu0 0.0
        %753 = vmatprep.subr.mxu0 0.0
        %754 = vmatpush1.msra.mxu0 0.0
        %755 = vmatprep.subr.mxu0 0.0
        %756 = vmatpush1.msra.mxu0 0.0
        %757 = vmatprep.subr.mxu0 0.0
        %758 = vmatpush1.msra.mxu0 0.0
        %759 = vmatprep.subr.mxu0 0.0
        %760 = vmatpush1.msra.mxu0 0.0
        %761 = vmatprep.subr.mxu0 0.0
        %762 = vmatpush1.msra.mxu0 0.0
        %763 = vmatprep.subr.mxu0 0.0
        %764 = vmatpush1.msra.mxu0 0.0
        %765 = vmatprep.subr.mxu0 0.0
        %766 = vmatpush1.msra.mxu0 0.0
        %767 = vmatprep.subr.mxu0 0.0
        %768 = vmatpush1.msra.mxu0 0.0
        %769 = vmatprep.subr.mxu0 0.0
        %770 = vmatpush1.msra.mxu0 0.0
        %771 = vmatprep.subr.mxu0 0.0
        %772 = vmatpush1.msra.mxu0 0.0
        %773 = vmatprep.subr.mxu0 0.0
        %774 = vmatpush1.msra.mxu0 0.0
        %775 = vmatprep.subr.mxu0 0.0
        %776 = vmatpush1.msra.mxu0 0.0
        %777 = vmatprep.subr.mxu0 0.0
        %778 = vmatpush1.msra.mxu0 0.0
        %779 = vmatprep.subr.mxu0 0.0
        %780 = vmatpush1.msra.mxu0 0.0
        %781 = vmatprep.mubr.f32.mxu0 0.0
        %782 = vmatmul.mubr.f32.gmra.mrb[0].mxu0 %v712
        %v783 = vpop.f32.mrb[0].mxu0
        %v784 = vadd.f32 0.0, %v783
        %v785 = vpop.f32.mrb[0].mxu0
        %786 = vmatprep.mubr.f32.mxu0 0.0
        %787 = vmatmul.mubr.f32.gmra.mrb[0].mxu0 %v715
        %v788 = vpop.f32.mrb[0].mxu0
        %v789 = vadd.f32 0.0, %v788
        %v790 = vpop.f32.mrb[0].mxu0
        %791 = vdwg.mxu0
        %v792 = vld [vmem:[%s6] sm:$0x1]
        %v794 = vlaneseq
        %v795 = vshrl.u32 %v794, 7
        %v796 = vsub.s32 0, %v795
        %v797 = vrot.slane %v792, %v796
        %v800 = vsel %vm504, %v519, 0
        %802 = vmatprep.subr.mxu0 0.0
        %803 = vmatpush1.msra.mxu0 %v784
        %804 = vmatprep.subr.mxu0 0.0
        %805 = vmatpush1.msra.mxu0 %v789
        %806 = vmatprep.subr.mxu0 0.0
        %807 = vmatpush1.msra.mxu0 0.0
        %808 = vmatprep.subr.mxu0 0.0
        %809 = vmatpush1.msra.mxu0 0.0
        %810 = vmatprep.subr.mxu0 0.0
        %811 = vmatpush1.msra.mxu0 0.0
        %812 = vmatprep.subr.mxu0 0.0
        %813 = vmatpush1.msra.mxu0 0.0
        %814 = vmatprep.subr.mxu0 0.0
        %815 = vmatpush1.msra.mxu0 0.0
        %816 = vmatprep.subr.mxu0 0.0
        %817 = vmatpush1.msra.mxu0 0.0
        %818 = vmatprep.subr.mxu0 0.0
        %819 = vmatpush1.msra.mxu0 0.0
        %820 = vmatprep.subr.mxu0 0.0
        %821 = vmatpush1.msra.mxu0 0.0
        %822 = vmatprep.subr.mxu0 0.0
        %823 = vmatpush1.msra.mxu0 0.0
        %824 = vmatprep.subr.mxu0 0.0
        %825 = vmatpush1.msra.mxu0 0.0
        %826 = vmatprep.subr.mxu0 0.0
        %827 = vmatpush1.msra.mxu0 0.0
        %828 = vmatprep.subr.mxu0 0.0
        %829 = vmatpush1.msra.mxu0 0.0
        %830 = vmatprep.subr.mxu0 0.0
        %831 = vmatpush1.msra.mxu0 0.0
        %832 = vmatprep.subr.mxu0 0.0
        %833 = vmatpush1.msra.mxu0 0.0
        %834 = vmatprep.subr.mxu0 0.0
        %835 = vmatpush1.msra.mxu0 0.0
        %836 = vmatprep.subr.mxu0 0.0
        %837 = vmatpush1.msra.mxu0 0.0
        %838 = vmatprep.subr.mxu0 0.0
        %839 = vmatpush1.msra.mxu0 0.0
        %840 = vmatprep.subr.mxu0 0.0
        %841 = vmatpush1.msra.mxu0 0.0
        %842 = vmatprep.subr.mxu0 0.0
        %843 = vmatpush1.msra.mxu0 0.0
        %844 = vmatprep.subr.mxu0 0.0
        %845 = vmatpush1.msra.mxu0 0.0
        %846 = vmatprep.subr.mxu0 0.0
        %847 = vmatpush1.msra.mxu0 0.0
        %848 = vmatprep.subr.mxu0 0.0
        %849 = vmatpush1.msra.mxu0 0.0
        %850 = vmatprep.subr.mxu0 0.0
        %851 = vmatpush1.msra.mxu0 0.0
        %852 = vmatprep.subr.mxu0 0.0
        %853 = vmatpush1.msra.mxu0 0.0
        %854 = vmatprep.subr.mxu0 0.0
        %855 = vmatpush1.msra.mxu0 0.0
        %856 = vmatprep.subr.mxu0 0.0
        %857 = vmatpush1.msra.mxu0 0.0
        %858 = vmatprep.subr.mxu0 0.0
        %859 = vmatpush1.msra.mxu0 0.0
        %860 = vmatprep.subr.mxu0 0.0
        %861 = vmatpush1.msra.mxu0 0.0
        %862 = vmatprep.subr.mxu0 0.0
        %863 = vmatpush1.msra.mxu0 0.0
        %864 = vmatprep.subr.mxu0 0.0
        %865 = vmatpush1.msra.mxu0 0.0
        %866 = vmatprep.mubr.f32.mxu0 0.0
        %867 = vmatmul.mubr.f32.gmra.mrb[0].mxu0 %v800
        %v868 = vpop.f32.mrb[0].mxu0
        %v869 = vadd.f32 %v797, %v868
        %v870 = vpop.f32.mrb[0].mxu0
        %871 = vdwg.mxu0
        %v872 = vmul.f32 %v869, %v869
        %v873 = vsel %vm480, %v872, 0.0
        %874 = vadd.xlane.f32.xlu0 %v873
        %v875 = vpop.xlane.xlu0 %874
        %v876 = vmax.f32 %v875, 1e-24
        %v877 = vrsqrt.pop %v876
        %v878 = vmul.f32 %v869, %v877
        %v879 = vld [vmem:[%s7] sm:$0xff]
        %v880 = vld [vmem:[%s7 + $0x8] sm:$0xff]
        %v881 = vld [vmem:[%s7 + $0x10] sm:$0xff]
        %v882 = vld [vmem:[%s7 + $0x18] sm:$0xff]
        %v883 = vld [vmem:[%s8] sm:$0x1]
        %v885 = vlaneseq
        %v886 = vshrl.u32 %v885, 7
        %v887 = vsub.s32 0, %v886
        %v888 = vrot.slane %v883, %v887
        %v891 = vsel %vm480, %v878, 0
        %893 = vmatprep.subr.mxu0 0.0
        %894 = vmatpush1.msra.mxu0 %v879
        %895 = vmatprep.subr.mxu0 0.0
        %896 = vmatpush1.msra.mxu0 %v880
        %897 = vmatprep.subr.mxu0 0.0
        %898 = vmatpush1.msra.mxu0 %v881
        %899 = vmatprep.subr.mxu0 0.0
        %900 = vmatpush1.msra.mxu0 %v882
        %901 = vmatprep.subr.mxu0 0.0
        %902 = vmatpush1.msra.mxu0 0.0
        %903 = vmatprep.subr.mxu0 0.0
        %904 = vmatpush1.msra.mxu0 0.0
        %905 = vmatprep.subr.mxu0 0.0
        %906 = vmatpush1.msra.mxu0 0.0
        %907 = vmatprep.subr.mxu0 0.0
        %908 = vmatpush1.msra.mxu0 0.0
        %909 = vmatprep.subr.mxu0 0.0
        %910 = vmatpush1.msra.mxu0 0.0
        %911 = vmatprep.subr.mxu0 0.0
        %912 = vmatpush1.msra.mxu0 0.0
        %913 = vmatprep.subr.mxu0 0.0
        %914 = vmatpush1.msra.mxu0 0.0
        %915 = vmatprep.subr.mxu0 0.0
        %916 = vmatpush1.msra.mxu0 0.0
        %917 = vmatprep.subr.mxu0 0.0
        %918 = vmatpush1.msra.mxu0 0.0
        %919 = vmatprep.subr.mxu0 0.0
        %920 = vmatpush1.msra.mxu0 0.0
        %921 = vmatprep.subr.mxu0 0.0
        %922 = vmatpush1.msra.mxu0 0.0
        %923 = vmatprep.subr.mxu0 0.0
        %924 = vmatpush1.msra.mxu0 0.0
        %925 = vmatprep.subr.mxu0 0.0
        %926 = vmatpush1.msra.mxu0 0.0
        %927 = vmatprep.subr.mxu0 0.0
        %928 = vmatpush1.msra.mxu0 0.0
        %929 = vmatprep.subr.mxu0 0.0
        %930 = vmatpush1.msra.mxu0 0.0
        %931 = vmatprep.subr.mxu0 0.0
        %932 = vmatpush1.msra.mxu0 0.0
        %933 = vmatprep.subr.mxu0 0.0
        %934 = vmatpush1.msra.mxu0 0.0
        %935 = vmatprep.subr.mxu0 0.0
        %936 = vmatpush1.msra.mxu0 0.0
        %937 = vmatprep.subr.mxu0 0.0
        %938 = vmatpush1.msra.mxu0 0.0
        %939 = vmatprep.subr.mxu0 0.0
        %940 = vmatpush1.msra.mxu0 0.0
        %941 = vmatprep.subr.mxu0 0.0
        %942 = vmatpush1.msra.mxu0 0.0
        %943 = vmatprep.subr.mxu0 0.0
        %944 = vmatpush1.msra.mxu0 0.0
        %945 = vmatprep.subr.mxu0 0.0
        %946 = vmatpush1.msra.mxu0 0.0
        %947 = vmatprep.subr.mxu0 0.0
        %948 = vmatpush1.msra.mxu0 0.0
        %949 = vmatprep.subr.mxu0 0.0
        %950 = vmatpush1.msra.mxu0 0.0
        %951 = vmatprep.subr.mxu0 0.0
        %952 = vmatpush1.msra.mxu0 0.0
        %953 = vmatprep.subr.mxu0 0.0
        %954 = vmatpush1.msra.mxu0 0.0
        %955 = vmatprep.subr.mxu0 0.0
        %956 = vmatpush1.msra.mxu0 0.0
        %957 = vmatprep.mubr.f32.mxu0 0.0
        %958 = vmatmul.mubr.f32.gmra.mrb[0].mxu0 %v891
        %v959 = vpop.f32.mrb[0].mxu0
        %v960 = vadd.f32 %v888, %v959
        %v961 = vpop.f32.mrb[0].mxu0
        %962 = vdwg.mxu0
        %v963 = vmax.f32 %v960, 0.0
        %v964 = vld [vmem:[%s9] sm:$0xff]
        %v965 = vld [vmem:[%s9 + $0x8] sm:$0xff]
        %v966 = vld [vmem:[%s9 + $0x10] sm:$0xff]
        %v967 = vld [vmem:[%s9 + $0x18] sm:$0xff]
        %v968 = vld [vmem:[%s10] sm:$0x1]
        %v970 = vlaneseq
        %v971 = vshrl.u32 %v970, 7
        %v972 = vsub.s32 0, %v971
        %v973 = vrot.slane %v968, %v972
        %v976 = vsel %vm480, %v963, 0
        %978 = vmatprep.subr.mxu0 0.0
        %979 = vmatpush1.msra.mxu0 %v964
        %980 = vmatprep.subr.mxu0 0.0
        %981 = vmatpush1.msra.mxu0 %v965
        %982 = vmatprep.subr.mxu0 0.0
        %983 = vmatpush1.msra.mxu0 %v966
        %984 = vmatprep.subr.mxu0 0.0
        %985 = vmatpush1.msra.mxu0 %v967
        %986 = vmatprep.subr.mxu0 0.0
        %987 = vmatpush1.msra.mxu0 0.0
        %988 = vmatprep.subr.mxu0 0.0
        %989 = vmatpush1.msra.mxu0 0.0
        %990 = vmatprep.subr.mxu0 0.0
        %991 = vmatpush1.msra.mxu0 0.0
        %992 = vmatprep.subr.mxu0 0.0
        %993 = vmatpush1.msra.mxu0 0.0
        %994 = vmatprep.subr.mxu0 0.0
        %995 = vmatpush1.msra.mxu0 0.0
        %996 = vmatprep.subr.mxu0 0.0
        %997 = vmatpush1.msra.mxu0 0.0
        %998 = vmatprep.subr.mxu0 0.0
        %999 = vmatpush1.msra.mxu0 0.0
        %1000 = vmatprep.subr.mxu0 0.0
        %1001 = vmatpush1.msra.mxu0 0.0
        %1002 = vmatprep.subr.mxu0 0.0
        %1003 = vmatpush1.msra.mxu0 0.0
        %1004 = vmatprep.subr.mxu0 0.0
        %1005 = vmatpush1.msra.mxu0 0.0
        %1006 = vmatprep.subr.mxu0 0.0
        %1007 = vmatpush1.msra.mxu0 0.0
        %1008 = vmatprep.subr.mxu0 0.0
        %1009 = vmatpush1.msra.mxu0 0.0
        %1010 = vmatprep.subr.mxu0 0.0
        %1011 = vmatpush1.msra.mxu0 0.0
        %1012 = vmatprep.subr.mxu0 0.0
        %1013 = vmatpush1.msra.mxu0 0.0
        %1014 = vmatprep.subr.mxu0 0.0
        %1015 = vmatpush1.msra.mxu0 0.0
        %1016 = vmatprep.subr.mxu0 0.0
        %1017 = vmatpush1.msra.mxu0 0.0
        %1018 = vmatprep.subr.mxu0 0.0
        %1019 = vmatpush1.msra.mxu0 0.0
        %1020 = vmatprep.subr.mxu0 0.0
        %1021 = vmatpush1.msra.mxu0 0.0
        %1022 = vmatprep.subr.mxu0 0.0
        %1023 = vmatpush1.msra.mxu0 0.0
        %1024 = vmatprep.subr.mxu0 0.0
        %1025 = vmatpush1.msra.mxu0 0.0
        %1026 = vmatprep.subr.mxu0 0.0
        %1027 = vmatpush1.msra.mxu0 0.0
        %1028 = vmatprep.subr.mxu0 0.0
        %1029 = vmatpush1.msra.mxu0 0.0
        %1030 = vmatprep.subr.mxu0 0.0
        %1031 = vmatpush1.msra.mxu0 0.0
        %1032 = vmatprep.subr.mxu0 0.0
        %1033 = vmatpush1.msra.mxu0 0.0
        %1034 = vmatprep.subr.mxu0 0.0
        %1035 = vmatpush1.msra.mxu0 0.0
        %1036 = vmatprep.subr.mxu0 0.0
        %1037 = vmatpush1.msra.mxu0 0.0
        %1038 = vmatprep.subr.mxu0 0.0
        %1039 = vmatpush1.msra.mxu0 0.0
        %1040 = vmatprep.subr.mxu0 0.0
        %1041 = vmatpush1.msra.mxu0 0.0
        %1042 = vmatprep.mubr.f32.mxu0 0.0
        %1043 = vmatmul.mubr.f32.gmra.mrb[0].mxu0 %v976
        %v1044 = vpop.f32.mrb[0].mxu0
        %v1045 = vadd.f32 %v973, %v1044
        %v1046 = vpop.f32.mrb[0].mxu0
        %1047 = vdwg.mxu0
        %v1048 = vmax.f32 %v1045, 0.0
        %v1050 = vsel %vm480, %v1048, 0
        %1052 = vmatprep.subr.mxu0 0.0
        %1053 = vmatpush1.msra.mxu0 %v964
        %1054 = vmatprep.subr.mxu0 0.0
        %1055 = vmatpush1.msra.mxu0 %v965
        %1056 = vmatprep.subr.mxu0 0.0
        %1057 = vmatpush1.msra.mxu0 %v966
        %1058 = vmatprep.subr.mxu0 0.0
        %1059 = vmatpush1.msra.mxu0 %v967
        %1060 = vmatprep.subr.mxu0 0.0
        %1061 = vmatpush1.msra.mxu0 0.0
        %1062 = vmatprep.subr.mxu0 0.0
        %1063 = vmatpush1.msra.mxu0 0.0
        %1064 = vmatprep.subr.mxu0 0.0
        %1065 = vmatpush1.msra.mxu0 0.0
        %1066 = vmatprep.subr.mxu0 0.0
        %1067 = vmatpush1.msra.mxu0 0.0
        %1068 = vmatprep.subr.mxu0 0.0
        %1069 = vmatpush1.msra.mxu0 0.0
        %1070 = vmatprep.subr.mxu0 0.0
        %1071 = vmatpush1.msra.mxu0 0.0
        %1072 = vmatprep.subr.mxu0 0.0
        %1073 = vmatpush1.msra.mxu0 0.0
        %1074 = vmatprep.subr.mxu0 0.0
        %1075 = vmatpush1.msra.mxu0 0.0
        %1076 = vmatprep.subr.mxu0 0.0
        %1077 = vmatpush1.msra.mxu0 0.0
        %1078 = vmatprep.subr.mxu0 0.0
        %1079 = vmatpush1.msra.mxu0 0.0
        %1080 = vmatprep.subr.mxu0 0.0
        %1081 = vmatpush1.msra.mxu0 0.0
        %1082 = vmatprep.subr.mxu0 0.0
        %1083 = vmatpush1.msra.mxu0 0.0
        %1084 = vmatprep.subr.mxu0 0.0
        %1085 = vmatpush1.msra.mxu0 0.0
        %1086 = vmatprep.subr.mxu0 0.0
        %1087 = vmatpush1.msra.mxu0 0.0
        %1088 = vmatprep.subr.mxu0 0.0
        %1089 = vmatpush1.msra.mxu0 0.0
        %1090 = vmatprep.subr.mxu0 0.0
        %1091 = vmatpush1.msra.mxu0 0.0
        %1092 = vmatprep.subr.mxu0 0.0
        %1093 = vmatpush1.msra.mxu0 0.0
        %1094 = vmatprep.subr.mxu0 0.0
        %1095 = vmatpush1.msra.mxu0 0.0
        %1096 = vmatprep.subr.mxu0 0.0
        %1097 = vmatpush1.msra.mxu0 0.0
        %1098 = vmatprep.subr.mxu0 0.0
        %1099 = vmatpush1.msra.mxu0 0.0
        %1100 = vmatprep.subr.mxu0 0.0
        %1101 = vmatpush1.msra.mxu0 0.0
        %1102 = vmatprep.subr.mxu0 0.0
        %1103 = vmatpush1.msra.mxu0 0.0
        %1104 = vmatprep.subr.mxu0 0.0
        %1105 = vmatpush1.msra.mxu0 0.0
        %1106 = vmatprep.subr.mxu0 0.0
        %1107 = vmatpush1.msra.mxu0 0.0
        %1108 = vmatprep.subr.mxu0 0.0
        %1109 = vmatpush1.msra.mxu0 0.0
        %1110 = vmatprep.subr.mxu0 0.0
        %1111 = vmatpush1.msra.mxu0 0.0
        %1112 = vmatprep.subr.mxu0 0.0
        %1113 = vmatpush1.msra.mxu0 0.0
        %1114 = vmatprep.subr.mxu0 0.0
        %1115 = vmatpush1.msra.mxu0 0.0
        %1116 = vmatprep.mubr.f32.mxu0 0.0
        %1117 = vmatmul.mubr.f32.gmra.mrb[0].mxu0 %v1050
        %v1118 = vpop.f32.mrb[0].mxu0
        %v1119 = vadd.f32 %v973, %v1118
        %v1120 = vpop.f32.mrb[0].mxu0
        %1121 = vdwg.mxu0
        %v1122 = vmul.f32 %v1119, %v1119
        %v1123 = vsel %vm480, %v1122, 0.0
        %1124 = vadd.xlane.f32.xlu0 %v1123
        %v1125 = vpop.xlane.xlu0 %1124
        %v1126 = vmax.f32 %v1125, 1e-24
        %v1127 = vrsqrt.pop %v1126
        %v1128 = vmul.f32 %v1119, %v1127
        %v1130 = vsel %vm504, %v475, 0
        %1132 = vmatprep.subr.mxu0 0.0
        %1133 = vmatpush1.msra.mxu0 %v699
        %1134 = vmatprep.subr.mxu0 0.0
        %1135 = vmatpush1.msra.mxu0 %v704
        %1136 = vmatprep.subr.mxu0 0.0
        %1137 = vmatpush1.msra.mxu0 0.0
        %1138 = vmatprep.subr.mxu0 0.0
        %1139 = vmatpush1.msra.mxu0 0.0
        %1140 = vmatprep.subr.mxu0 0.0
        %1141 = vmatpush1.msra.mxu0 0.0
        %1142 = vmatprep.subr.mxu0 0.0
        %1143 = vmatpush1.msra.mxu0 0.0
        %1144 = vmatprep.subr.mxu0 0.0
        %1145 = vmatpush1.msra.mxu0 0.0
        %1146 = vmatprep.subr.mxu0 0.0
        %1147 = vmatpush1.msra.mxu0 0.0
        %1148 = vmatprep.subr.mxu0 0.0
        %1149 = vmatpush1.msra.mxu0 0.0
        %1150 = vmatprep.subr.mxu0 0.0
        %1151 = vmatpush1.msra.mxu0 0.0
        %1152 = vmatprep.subr.mxu0 0.0
        %1153 = vmatpush1.msra.mxu0 0.0
        %1154 = vmatprep.subr.mxu0 0.0
        %1155 = vmatpush1.msra.mxu0 0.0
        %1156 = vmatprep.subr.mxu0 0.0
        %1157 = vmatpush1.msra.mxu0 0.0
        %1158 = vmatprep.subr.mxu0 0.0
        %1159 = vmatpush1.msra.mxu0 0.0
        %1160 = vmatprep.subr.mxu0 0.0
        %1161 = vmatpush1.msra.mxu0 0.0
        %1162 = vmatprep.subr.mxu0 0.0
        %1163 = vmatpush1.msra.mxu0 0.0
        %1164 = vmatprep.subr.mxu0 0.0
        %1165 = vmatpush1.msra.mxu0 0.0
        %1166 = vmatprep.subr.mxu0 0.0
        %1167 = vmatpush1.msra.mxu0 0.0
        %1168 = vmatprep.subr.mxu0 0.0
        %1169 = vmatpush1.msra.mxu0 0.0
        %1170 = vmatprep.subr.mxu0 0.0
        %1171 = vmatpush1.msra.mxu0 0.0
        %1172 = vmatprep.subr.mxu0 0.0
        %1173 = vmatpush1.msra.mxu0 0.0
        %1174 = vmatprep.subr.mxu0 0.0
        %1175 = vmatpush1.msra.mxu0 0.0
        %1176 = vmatprep.subr.mxu0 0.0
        %1177 = vmatpush1.msra.mxu0 0.0
        %1178 = vmatprep.subr.mxu0 0.0
        %1179 = vmatpush1.msra.mxu0 0.0
        %1180 = vmatprep.subr.mxu0 0.0
        %1181 = vmatpush1.msra.mxu0 0.0
        %1182 = vmatprep.subr.mxu0 0.0
        %1183 = vmatpush1.msra.mxu0 0.0
        %1184 = vmatprep.subr.mxu0 0.0
        %1185 = vmatpush1.msra.mxu0 0.0
        %1186 = vmatprep.subr.mxu0 0.0
        %1187 = vmatpush1.msra.mxu0 0.0
        %1188 = vmatprep.subr.mxu0 0.0
        %1189 = vmatpush1.msra.mxu0 0.0
        %1190 = vmatprep.subr.mxu0 0.0
        %1191 = vmatpush1.msra.mxu0 0.0
        %1192 = vmatprep.subr.mxu0 0.0
        %1193 = vmatpush1.msra.mxu0 0.0
        %1194 = vmatprep.subr.mxu0 0.0
        %1195 = vmatpush1.msra.mxu0 0.0
        %1196 = vmatprep.mubr.f32.mxu0 0.0
        %1197 = vmatmul.mubr.f32.gmra.mrb[0].mxu0 %v1130
        %v1198 = vpop.f32.mrb[0].mxu0
        %v1199 = vadd.f32 0.0, %v1198
        %v1200 = vpop.f32.mrb[0].mxu0
        %1201 = vdwg.mxu0
        %v1202 = vmul.f32 %v1199, %v1199
        %v1203 = vsel %vm480, %v1202, 0.0
        %1204 = vadd.xlane.f32.xlu0 %v1203
        %v1205 = vpop.xlane.xlu0 %1204
        %v1206 = vmax.f32 %v1205, 1e-24
        %v1207 = vrsqrt.pop %v1206
        %v1208 = vmul.f32 %v1199, %v1207
        %v1210 = vsel %vm480, %v1208, 0
        %v1213 = vsel %vm480, %v1128, 0
        %1215 = vmatprep.subr.mxu0 0.0
        %1216 = vmatpush1.xpose.msra.mxu0 %v1213
        %1217 = vmatprep.subr.mxu0 0.0
        %1218 = vmatpush1.xpose.msra.mxu0 0.0
        %1219 = vmatprep.subr.mxu0 0.0
        %1220 = vmatpush1.xpose.msra.mxu0 0.0
        %1221 = vmatprep.subr.mxu0 0.0
        %1222 = vmatpush1.xpose.msra.mxu0 0.0
        %1223 = vmatprep.subr.mxu0 0.0
        %1224 = vmatpush1.xpose.msra.mxu0 0.0
        %1225 = vmatprep.subr.mxu0 0.0
        %1226 = vmatpush1.xpose.msra.mxu0 0.0
        %1227 = vmatprep.subr.mxu0 0.0
        %1228 = vmatpush1.xpose.msra.mxu0 0.0
        %1229 = vmatprep.subr.mxu0 0.0
        %1230 = vmatpush1.xpose.msra.mxu0 0.0
        %1231 = vmatprep.subr.mxu0 0.0
        %1232 = vmatpush1.xpose.msra.mxu0 0.0
        %1233 = vmatprep.subr.mxu0 0.0
        %1234 = vmatpush1.xpose.msra.mxu0 0.0
        %1235 = vmatprep.subr.mxu0 0.0
        %1236 = vmatpush1.xpose.msra.mxu0 0.0
        %1237 = vmatprep.subr.mxu0 0.0
        %1238 = vmatpush1.xpose.msra.mxu0 0.0
        %1239 = vmatprep.subr.mxu0 0.0
        %1240 = vmatpush1.xpose.msra.mxu0 0.0
        %1241 = vmatprep.subr.mxu0 0.0
        %1242 = vmatpush1.xpose.msra.mxu0 0.0
        %1243 = vmatprep.subr.mxu0 0.0
        %1244 = vmatpush1.xpose.msra.mxu0 0.0
        %1245 = vmatprep.subr.mxu0 0.0
        %1246 = vmatpush1.xpose.msra.mxu0 0.0
        %1247 = vmatprep.subr.mxu0 0.0
        %1248 = vmatpush1.xpose.msra.mxu0 0.0
        %1249 = vmatprep.subr.mxu0 0.0
        %1250 = vmatpush1.xpose.msra.mxu0 0.0
        %1251 = vmatprep.subr.mxu0 0.0
        %1252 = vmatpush1.xpose.msra.mxu0 0.0
        %1253 = vmatprep.subr.mxu0 0.0
        %1254 = vmatpush1.xpose.msra.mxu0 0.0
        %1255 = vmatprep.subr.mxu0 0.0
        %1256 = vmatpush1.xpose.msra.mxu0 0.0
        %1257 = vmatprep.subr.mxu0 0.0
        %1258 = vmatpush1.xpose.msra.mxu0 0.0
        %1259 = vmatprep.subr.mxu0 0.0
        %1260 = vmatpush1.xpose.msra.mxu0 0.0
        %1261 = vmatprep.subr.mxu0 0.0
        %1262 = vmatpush1.xpose.msra.mxu0 0.0
        %1263 = vmatprep.subr.mxu0 0.0
        %1264 = vmatpush1.xpose.msra.mxu0 0.0
        %1265 = vmatprep.subr.mxu0 0.0
        %1266 = vmatpush1.xpose.msra.mxu0 0.0
        %1267 = vmatprep.subr.mxu0 0.0
        %1268 = vmatpush1.xpose.msra.mxu0 0.0
        %1269 = vmatprep.subr.mxu0 0.0
        %1270 = vmatpush1.xpose.msra.mxu0 0.0
        %1271 = vmatprep.subr.mxu0 0.0
        %1272 = vmatpush1.xpose.msra.mxu0 0.0
        %1273 = vmatprep.subr.mxu0 0.0
        %1274 = vmatpush1.xpose.msra.mxu0 0.0
        %1275 = vmatprep.subr.mxu0 0.0
        %1276 = vmatpush1.xpose.msra.mxu0 0.0
        %1277 = vmatprep.subr.mxu0 0.0
        %1278 = vmatpush1.xpose.msra.mxu0 0.0
        %1279 = vmatprep.mubr.f32.mxu0 0.0
        %1280 = vmatmul.mubr.f32.gmra.mrb[0].mxu0 %v891
        %v1281 = vpop.f32.mrb[0].mxu0
        %v1282 = vadd.f32 0.0, %v1281
        %v1283 = vpop.f32.mrb[0].mxu0
        %1284 = vmatprep.mubr.f32.mxu0 0.0
        %1285 = vmatmul.mubr.f32.gmra.mrb[0].mxu0 %v1210
        %v1286 = vpop.f32.mrb[0].mxu0
        %v1287 = vadd.f32 0.0, %v1286
        %v1288 = vpop.f32.mrb[0].mxu0
        %1289 = vdwg.mxu0
        %v1290 = vmul.f32 %v1282, 2.0
        %v1291 = vmul.f32 %v1287, 2.0
        %vm1292 = vcmask 64512
        %v1293 = vsel %vm1292, %v1290, -inf
        %v1294 = vrot.slane %v1293, 4
        %v1295 = vmax.f32 %v1293, %v1294
        %v1296 = vrot.slane %v1295, 2
        %v1297 = vmax.f32 %v1295, %v1296
        %v1298 = vrot.slane %v1297, 1
        %v1299 = vmax.f32 %v1297, %v1298
        %v1300 = vsub.f32 %v1290, %v1299
        %v1301 = vmul.f32 %v1300, 1.442695
        %v1302 = vpow.pop %v1301
        %v1303 = vsel %vm1292, %v1302, 0.0
        %v1304 = vrot.slane %v1303, 4
        %v1305 = vadd.f32 %v1303, %v1304
        %v1306 = vrot.slane %v1305, 2
        %v1307 = vadd.f32 %v1305, %v1306
        %v1308 = vrot.slane %v1307, 1
        %v1309 = vadd.f32 %v1307, %v1308
        %v1310 = vlog2.pop %v1309
        %v1311 = vmul.f32 %v1310, 0.6931472
        %v1312 = vadd.f32 %v1299, %v1311
        %v1313 = vsel %vm1292, %v1291, -inf
        %v1314 = vrot.slane %v1313, 4
        %v1315 = vmax.f32 %v1313, %v1314
        %v1316 = vrot.slane %v1315, 2
        %v1317 = vmax.f32 %v1315, %v1316
        %v1318 = vrot.slane %v1317, 1
        %v1319 = vmax.f32 %v1317, %v1318
        %v1320 = vsub.f32 %v1291, %v1319
        %v1321 = vmul.f32 %v1320, 1.442695
        %v1322 = vpow.pop %v1321
        %v1323 = vsel %vm1292, %v1322, 0.0
        %v1324 = vrot.slane %v1323, 4
        %v1325 = vadd.f32 %v1323, %v1324
        %v1326 = vrot.slane %v1325, 2
        %v1327 = vadd.f32 %v1325, %v1326
        %v1328 = vrot.slane %v1327, 1
        %v1329 = vadd.f32 %v1327, %v1328
        %v1330 = vlog2.pop %v1329
        %v1331 = vmul.f32 %v1330, 0.6931472
        %v1332 = vadd.f32 %v1319, %v1331
        %v1333 = vmul.f32 %v1128, %v878
        %v1334 = vsel %vm480, %v1333, 0.0
        %1335 = vadd.xlane.f32.xlu0 %v1334
        %v1336 = vpop.xlane.xlu0 %1335
        %v1337 = vmul.f32 %v1336, 2.0
        %v1338 = vmul.f32 %v1128, %v1208
        %v1339 = vsel %vm480, %v1338, 0.0
        %1340 = vadd.xlane.f32.xlu0 %v1339
        %v1341 = vpop.xlane.xlu0 %1340
        %v1342 = vmul.f32 %v1341, 2.0
        %vm1343 = vcmask 57344
        %v1344 = vsel %vm1343, %v1312, 0.0
        %1345 = vadd.xlane.f32.xlu0 %v1344
        %v1346 = vpop.xlane.xlu0 %1345
        %v1347 = vrot.slane %v1346, 4
        %v1348 = vadd.f32 %v1346, %v1347
        %v1349 = vrot.slane %v1348, 2
        %v1350 = vadd.f32 %v1348, %v1349
        %v1351 = vrot.slane %v1350, 1
        %v1352 = vadd.f32 %v1350, %v1351
        %s1353 = vtos %v1352
        %vm1354 = vcmask 7168
        %v1355 = vsel %vm1354, %v1337, 0.0
        %1356 = vadd.xlane.f32.xlu0 %v1355
        %v1357 = vpop.xlane.xlu0 %1356
        %v1358 = vrot.slane %v1357, 4
        %v1359 = vadd.f32 %v1357, %v1358
        %v1360 = vrot.slane %v1359, 2
        %v1361 = vadd.f32 %v1359, %v1360
        %v1362 = vrot.slane %v1361, 1
        %v1363 = vadd.f32 %v1361, %v1362
        %s1364 = vtos %v1363
        %s1365 = ssub.f32 %s1353, %s1364
        %v1366 = vsel %vm1343, %v1332, 0.0
        %1367 = vadd.xlane.f32.xlu0 %v1366
        %v1368 = vpop.xlane.xlu0 %1367
        %v1369 = vrot.slane %v1368, 4
        %v1370 = vadd.f32 %v1368, %v1369
        %v1371 = vrot.slane %v1370, 2
        %v1372 = vadd.f32 %v1370, %v1371
        %v1373 = vrot.slane %v1372, 1
        %v1374 = vadd.f32 %v1372, %v1373
        %s1375 = vtos %v1374
        %v1376 = vsel %vm1354, %v1342, 0.0
        %1377 = vadd.xlane.f32.xlu0 %v1376
        %v1378 = vpop.xlane.xlu0 %1377
        %v1379 = vrot.slane %v1378, 4
        %v1380 = vadd.f32 %v1378, %v1379
        %v1381 = vrot.slane %v1380, 2
        %v1382 = vadd.f32 %v1380, %v1381
        %v1383 = vrot.slane %v1382, 1
        %v1384 = vadd.f32 %v1382, %v1383
        %s1385 = vtos %v1384
        %s1386 = ssub.f32 %s1375, %s1385
        %s1387 = smul.f32 %s1386, 0.8
        %s1388 = sadd.f32 %s1365, %s1387
        %1389 = vst.msk [vmem:[%s450] sm:$0xff] %vm480, %v1128
        %s1390 = scalar_lea.vmem %s450, 8 [#allocation5]
        %1391 = vst.msk [vmem:[%s1390] sm:$0xff] %vm480, %v878
        %s1392 = smul.f32 %s1388, 0.125
        %v1393 = vstv %s1392
        %vm1394 = vcmask 0
        %1395 = vst.msk [vmem:[%s472] sm:$0x1] %vm1394, %v1393
        %s1396 = sand.u32 %s282, 1
        %s1397 = scalar_lea.sflag [#allocation4], %s1396
        %s1398 = sand.u32 %s282, 1
        %s1399 = smul.addr %s1398, 16
        %s1400 = scalar_lea.vmem [#allocation5], %s1399
        %p1401 = scmp.lt.s32.totalorder %s28, 3
        %s1402 = scalar_select %p1401, %s28, 3
        %s1403 = scalar_lea.vmem %s12, %s1402
        // Predicated region
        $region69: #{tpu_custom_call.1} parent=63 // pred_check
          %p1404 = pneg %p292
        $region70: #{tpu_custom_call.1} parent=63 // pred_check_branch
          %1406 = sbr.rel (%p1404) target = $region72
        $region71: #{tpu_custom_call.1} parent=63 // pred_region
          %s1408 = ssub.s32 256, 256
          %1409 = vsyncadd %s1397, %s1408
          %s1410 = smul.addr %s28, 2
          %s1411 = smul.addr %s1410, 128
          %s1412 = scalar_lea.hbm %s11, %s1411
          %s1413 = sshll.u32 %s1400, 4
          %s1414 = int_to_ptr.vmem [resolvable:$true] %s1413
          %1419 = dma.vmem_to_hbm [thread:$0]  %s1414, 256, %s1412, %s1397, 128, 128, 8
        $region72: #{tpu_custom_call.1} parent=63 // pred_fallthru
          _
        // Predicated region
        $region73: #{tpu_custom_call.1} parent=63 // pred_check
          %p1420 = pneg %p318
        $region74: #{tpu_custom_call.1} parent=63 // pred_check_branch
          %1422 = sbr.rel (%p1420) target = $region76
        $region75: #{tpu_custom_call.1} parent=63 // pred_region
          _
        $region76: #{tpu_custom_call.1} parent=63 // pred_fallthru
          _
      $region64: #{tpu_custom_call.1} parent=5 // pred_fallthru
        _
      %p1423 = scmp.le.s32.totalorder 2, %s23
      // Predicated region
      $region77: #{tpu_custom_call.1} parent=5 // pred_check
        %p1424 = pneg %p1423
      $region78: #{tpu_custom_call.1} parent=5 // pred_check_branch
        %1426 = sbr.rel (%p1424) target = $region80
      $region79: #{tpu_custom_call.1} parent=5 // pred_region
        %s1427 = ssub.s32 %s23, 2
        // Predicated region
        $region81: #{tpu_custom_call.1} parent=79 // pred_check
          %p1428 = pneg %p298
        $region82: #{tpu_custom_call.1} parent=79 // pred_check_branch
          %1430 = sbr.rel (%p1428) target = $region84
        $region83: #{tpu_custom_call.1} parent=79 // pred_region
          %s1431 = sand.u32 %s283, 1
          %s1432 = scalar_lea.sflag [#allocation4], %s1431
          %s1433 = sand.u32 %s283, 1
          %s1434 = smul.addr %s1433, 16
          %s1435 = scalar_lea.vmem [#allocation5], %s1434
          %1436 = dma.done %s1432, 256
        $region84: #{tpu_custom_call.1} parent=79 // pred_fallthru
          _
        // Predicated region
        $region85: #{tpu_custom_call.1} parent=79 // pred_check
          %p1437 = pneg %p324
        $region86: #{tpu_custom_call.1} parent=79 // pred_check_branch
          %1439 = sbr.rel (%p1437) target = $region88
        $region87: #{tpu_custom_call.1} parent=79 // pred_region
          %p1440 = scmp.lt.s32.totalorder %s29, 3
          %s1441 = scalar_select %p1440, %s29, 3
          %s1442 = scalar_lea.vmem %s12, %s1441
        $region88: #{tpu_custom_call.1} parent=79 // pred_fallthru
          _
      $region80: #{tpu_custom_call.1} parent=5 // pred_fallthru
        _
    $region6: #{tpu_custom_call.1} parent=1 // loop_footer
      %s27 = sadd.s32 1, %s23
    $region7: #{tpu_custom_call.1} parent=1 // loop_footer_branch
      %22 = sbr.rel target = $region3
    $region8: #{tpu_custom_call.1} parent=1 // loop_exit
      _
    %1443 = vsyncpa [#allocation3], 1
    %s1444 = scalar_lea.sflag [#allocation3], 1
    %1445 = vsyncpa %s1444, 1
    %1446 = vsyncpa [#allocation4], 1
    %s1447 = scalar_lea.sflag [#allocation4], 1
    %1448 = vsyncpa %s1447, 1

</llo_original>
